<compile_context>
chip_gen: v6e
topology: v6e:2x2x1
jax: 0.10.0
libtpu: 0.0.40
codegen_flags: <defaults>
</compile_context>

<pallas_src>
import functools

import jax
import jax.numpy as jnp
from jax.experimental import pallas as pl
from jax.experimental.pallas import tpu as pltpu


def _encoder_layer_kernel(
    x_ref,
    wqkv_ref, bqkv_ref, wo_ref, bo_ref,
    w1_ref, b1_ref, w2_ref, b2_ref,
    g1_ref, be1_ref, g2_ref, be2_ref,
    out_ref,
    *, batch, seq, num_heads, depth,
):
    f32 = jnp.float32
    bf16 = jnp.bfloat16
    d_model = num_heads * depth
    n_tok = batch * seq

    x = x_ref[...].astype(f32)          # (N, D) f32 copy kept for residuals / LN
    x_bf = x.astype(bf16)

    # ---- fused QKV projection: one MXU matmul with 3*D output columns ----
    qkv = jnp.dot(x_bf, wqkv_ref[...], preferred_element_type=f32) + bqkv_ref[...]

    inv_sqrt_dk = depth ** -0.5          # static python scalar
    q = qkv[:, :d_model] * inv_sqrt_dk   # fold 1/sqrt(d_k) into q (saves S*S muls/head)
    k = qkv[:, d_model:2 * d_model]
    v = qkv[:, 2 * d_model:]

    # ---- head-batched attention: (B*H, S, depth), no per-head python loop ----
    def split_heads(t):
        t = t.reshape(batch, seq, num_heads, depth)
        t = t.transpose(0, 2, 1, 3)                       # (B, H, S, depth)
        return t.reshape(batch * num_heads, seq, depth).astype(bf16)

    qh = split_heads(q)
    kh = split_heads(k)
    vh = split_heads(v)

    # Q.K^T without a materialized transpose (contract over depth).
    scores = jnp.einsum("bqd,bkd->bqk", qh, kh, preferred_element_type=f32)

    # softmax in f32; the per-row divide goes to the EUP via approx reciprocal.
    scores = scores - jnp.max(scores, axis=-1, keepdims=True)
    e = jnp.exp(scores)
    attn = e * pl.reciprocal(jnp.sum(e, axis=-1, keepdims=True), approx=True)

    ctx = jnp.einsum("bqk,bkd->bqd", attn.astype(bf16), vh,
                     preferred_element_type=f32)          # (B*H, S, depth)

    # merge heads back to (N, D)
    ctx = ctx.reshape(batch, num_heads, seq, depth).transpose(0, 2, 1, 3)
    ctx = ctx.reshape(n_tok, d_model)

    attn_out = jnp.dot(ctx.astype(bf16), wo_ref[...],
                       preferred_element_type=f32) + bo_ref[...]

    # ---- residual + LayerNorm (f32 statistics, biased var, eps=1e-5) ----
    def layer_norm(y, g, b):
        mu = jnp.mean(y, axis=-1, keepdims=True)
        var = jnp.mean((y - mu) ** 2, axis=-1, keepdims=True)
        return (y - mu) * jax.lax.rsqrt(var + 1e-5) * g + b

    out1 = layer_norm(x + attn_out, g1_ref[...], be1_ref[...])

    # ---- FFN: Linear -> ReLU -> Linear (bf16 MXU operands, f32 accumulate) ----
    h1 = jnp.maximum(
        jnp.dot(out1.astype(bf16), w1_ref[...], preferred_element_type=f32)
        + b1_ref[...],
        0.0)
    ffn_out = jnp.dot(h1.astype(bf16), w2_ref[...],
                      preferred_element_type=f32) + b2_ref[...]

    # ---- residual + LayerNorm 2 ----
    out2 = layer_norm(out1 + ffn_out, g2_ref[...], be2_ref[...])
    # NOTE: at the real d_model=512 this store is lane-dense (512 = 4*128);
    # the toy D=32 test shape necessarily uses masked stores.
    out_ref[...] = out2.astype(out_ref.dtype)


def encoder_layer(x, params, num_heads):
    """x: (B, S, D) float32.  params: dict of f32 weights in (in, out) layout,
    biases / LayerNorm params as (1, dim)."""
    B, S, D = x.shape
    depth = D // num_heads
    d_ff = params["w1"].shape[1]
    n_tok = B * S
    bf16 = jnp.bfloat16

    # Fuse QKV weights/biases wrapper-side (free XLA ops); pre-cast all matmul
    # weights to bf16 so only half the weight bytes are resident in VMEM.
    wqkv = jnp.concatenate([params["wq"], params["wk"], params["wv"]], axis=1).astype(bf16)
    bqkv = jnp.concatenate([params["bq"], params["bk"], params["bv"]], axis=1)

    ordered = [
        wqkv, bqkv,
        params["wo"].astype(bf16), params["bo"],
        params["w1"].astype(bf16), params["b1"],
        params["w2"].astype(bf16), params["b2"],
        params["g1"], params["be1"], params["g2"], params["be2"],
    ]

    x2 = x.reshape(n_tok, D)

    kernel = functools.partial(
        _encoder_layer_kernel, batch=B, seq=S, num_heads=num_heads, depth=depth)

    flops = (
        2 * n_tok * D * (3 * D)      # fused QKV projection
        + 4 * n_tok * S * D          # scores + attn.V over all heads
        + 2 * n_tok * D * D          # output projection
        + 4 * n_tok * D * d_ff       # FFN (two matmuls)
    )
    transcendentals = num_heads * n_tok * S + 4 * n_tok
    bytes_accessed = (
        2 * (D * 3 * D + D * D + 2 * D * d_ff)           # bf16 weights
        + 4 * (3 * D + D + d_ff + D + 4 * D)             # f32 biases + LN params
        + 4 * 2 * n_tok * D                              # x in + out
    )

    vmem_spec = pl.BlockSpec(memory_space=pltpu.MemorySpace.VMEM)

    out2 = pl.pallas_call(
        kernel,
        out_shape=jax.ShapeDtypeStruct((n_tok, D), x.dtype),
        in_specs=[vmem_spec] * (1 + len(ordered)),
        out_specs=vmem_spec,
        cost_estimate=pl.CostEstimate(
            flops=int(flops),
            transcendentals=int(transcendentals),
            bytes_accessed=int(bytes_accessed)),
        compiler_params=pltpu.CompilerParams(
            vmem_limit_bytes=32 * 1024 * 1024),
    )(x2, *ordered)

    return out2.reshape(B, S, D)


def _reference(x, params, num_heads):
    """Plain-JAX (f32) reference of EncoderLayer.forward for validation."""
    B, S, D = x.shape
    depth = D // num_heads

    def lin(inp, w, b):
        return inp @ w + b

    q = lin(x, params["wq"], params["bq"]).reshape(B, S, num_heads, depth).transpose(0, 2, 1, 3)
    k = lin(x, params["wk"], params["bk"]).reshape(B, S, num_heads, depth).transpose(0, 2, 1, 3)
    v = lin(x, params["wv"], params["bv"]).reshape(B, S, num_heads, depth).transpose(0, 2, 1, 3)
    scores = jnp.einsum("bhqd,bhkd->bhqk", q, k) / jnp.sqrt(jnp.float32(depth))
    attn = jax.nn.softmax(scores, axis=-1)
    o = jnp.einsum("bhqk,bhkd->bhqd", attn, v).transpose(0, 2, 1, 3).reshape(B, S, D)
    attn_out = lin(o, params["wo"], params["bo"])

    def ln(y, g, b):
        mu = jnp.mean(y, axis=-1, keepdims=True)
        var = jnp.mean((y - mu) ** 2, axis=-1, keepdims=True)
        return (y - mu) * jax.lax.rsqrt(var + 1e-5) * g + b

    out1 = ln(x + attn_out, params["g1"], params["be1"])
    h1 = jax.nn.relu(lin(out1, params["w1"], params["b1"]))
    ffn = lin(h1, params["w2"], params["b2"])
    return ln(out1 + ffn, params["g2"], params["be2"])


def init_params(key, d_model):
    """Deterministic synthetic parameters (PyTorch Linear weights are (out,in);
    we store the transposed (in,out) layout used by the kernel)."""
    d_ff = 4 * d_model
    keys = jax.random.split(key, 12)
    s = 0.05

    def w(k, shape):
        return jax.random.normal(k, shape, jnp.float32) * s

    return {
        "wq": w(keys[0], (d_model, d_model)), "bq": w(keys[1], (1, d_model)),
        "wk": w(keys[2], (d_model, d_model)), "bk": w(keys[3], (1, d_model)),
        "wv": w(keys[4], (d_model, d_model)), "bv": w(keys[5], (1, d_model)),
        "wo": w(keys[6], (d_model, d_model)), "bo": w(keys[7], (1, d_model)),
        "w1": w(keys[8], (d_model, d_ff)),    "b1": w(keys[9], (1, d_ff)),
        "w2": w(keys[10], (d_ff, d_model)),   "b2": w(keys[11], (1, d_model)),
        # nn.LayerNorm default init: weight=1, bias=0
        "g1": jnp.ones((1, d_model), jnp.float32),
        "be1": jnp.zeros((1, d_model), jnp.float32),
        "g2": jnp.ones((1, d_model), jnp.float32),
        "be2": jnp.zeros((1, d_model), jnp.float32),
    }


if __name__ == "__main__":
    B, S, D, H = 2, 8, 32, 4   # small shapes: batch=2, seq=8, d_model=32, heads=4
    key = jax.random.PRNGKey(0)
    kx, kp = jax.random.split(key)
    x = jax.random.normal(kx, (B, S, D), jnp.float32)
    params = init_params(kp, D)

    out = encoder_layer(x, params, H)
    out = jax.block_until_ready(out)

    ref = _reference(x, params, H)
    assert out.shape == (B, S, D)
    # bf16 MXU operands + approx reciprocal => compare to the f32 reference at a
    # bf16-appropriate tolerance (LayerNorm keeps the output at unit scale).
    assert jnp.allclose(out, ref, atol=2e-2, rtol=2e-2), "mismatch vs reference"
    print("KERNEL_OK")
</pallas_src>

<mosaic_0001>
module attributes {stable_mosaic.version = 11 : i64} {
  func.func @_encoder_layer_kernel(%arg0: memref<16x32xf32, #tpu.memory_space<vmem>>, %arg1: memref<32x96xbf16, #tpu.memory_space<vmem>>, %arg2: memref<1x96xf32, #tpu.memory_space<vmem>>, %arg3: memref<32x32xbf16, #tpu.memory_space<vmem>>, %arg4: memref<1x32xf32, #tpu.memory_space<vmem>>, %arg5: memref<32x128xbf16, #tpu.memory_space<vmem>>, %arg6: memref<1x128xf32, #tpu.memory_space<vmem>>, %arg7: memref<128x32xbf16, #tpu.memory_space<vmem>>, %arg8: memref<1x32xf32, #tpu.memory_space<vmem>>, %arg9: memref<1x32xf32, #tpu.memory_space<vmem>>, %arg10: memref<1x32xf32, #tpu.memory_space<vmem>>, %arg11: memref<1x32xf32, #tpu.memory_space<vmem>>, %arg12: memref<1x32xf32, #tpu.memory_space<vmem>>, %arg13: memref<16x32xf32, #tpu.memory_space<vmem>>) attributes {dimension_semantics = [], scalar_prefetch = 0 : i64, scratch_operands = 0 : i64, tpu.core_type = #tpu.core_type<tc>} {
    %c0 = arith.constant 0 : index
    %c0_0 = arith.constant 0 : index
    %0 = vector.load %arg0[%c0, %c0_0] : memref<16x32xf32, #tpu.memory_space<vmem>>, vector<16x32xf32>
    %1 = arith.truncf %0 : vector<16x32xf32> to vector<16x32xbf16>
    %c0_1 = arith.constant 0 : index
    %c0_2 = arith.constant 0 : index
    %2 = vector.load %arg1[%c0_1, %c0_2] : memref<32x96xbf16, #tpu.memory_space<vmem>>, vector<32x96xbf16>
    %cst = arith.constant dense<0.000000e+00> : vector<16x96xf32>
    %3 = tpu.matmul %1, %2, %cst {dimension_numbers = #tpu.dot_dimension_numbers<[1], [0], [0], [1], [0, 0, 1, 1], [], []>} : vector<16x32xbf16>, vector<32x96xbf16>, vector<16x96xf32> -> vector<16x96xf32>
    %c0_3 = arith.constant 0 : index
    %c0_4 = arith.constant 0 : index
    %4 = vector.load %arg2[%c0_3, %c0_4] : memref<1x96xf32, #tpu.memory_space<vmem>>, vector<1x96xf32>
    %5 = vector.broadcast %4 : vector<1x96xf32> to vector<16x96xf32>
    %6 = arith.addf %3, %5 : vector<16x96xf32>
    %7 = vector.extract_strided_slice %6 {offsets = [0, 0], sizes = [16, 32], strides = [1, 1]} : vector<16x96xf32> to vector<16x32xf32>
    %cst_5 = arith.constant 0.353553385 : f32
    %8 = vector.broadcast %cst_5 : f32 to vector<16x32xf32>
    %9 = arith.mulf %7, %8 : vector<16x32xf32>
    %10 = vector.extract_strided_slice %6 {offsets = [0, 32], sizes = [16, 32], strides = [1, 1]} : vector<16x96xf32> to vector<16x32xf32>
    %11 = vector.extract_strided_slice %6 {offsets = [0, 64], sizes = [16, 32], strides = [1, 1]} : vector<16x96xf32> to vector<16x32xf32>
    %12 = vector.shape_cast %9 : vector<16x32xf32> to vector<2x8x4x8xf32>
    %13 = tpu.transpose %12, [0, 2, 1, 3] : vector<2x8x4x8xf32> -> vector<2x4x8x8xf32>
    %14 = vector.shape_cast %13 : vector<2x4x8x8xf32> to vector<8x8x8xf32>
    %15 = arith.truncf %14 : vector<8x8x8xf32> to vector<8x8x8xbf16>
    %16 = vector.shape_cast %10 : vector<16x32xf32> to vector<2x8x4x8xf32>
    %17 = tpu.transpose %16, [0, 2, 1, 3] : vector<2x8x4x8xf32> -> vector<2x4x8x8xf32>
    %18 = vector.shape_cast %17 : vector<2x4x8x8xf32> to vector<8x8x8xf32>
    %19 = arith.truncf %18 : vector<8x8x8xf32> to vector<8x8x8xbf16>
    %20 = vector.shape_cast %11 : vector<16x32xf32> to vector<2x8x4x8xf32>
    %21 = tpu.transpose %20, [0, 2, 1, 3] : vector<2x8x4x8xf32> -> vector<2x4x8x8xf32>
    %22 = vector.shape_cast %21 : vector<2x4x8x8xf32> to vector<8x8x8xf32>
    %23 = arith.truncf %22 : vector<8x8x8xf32> to vector<8x8x8xbf16>
    "tpu.trace_start"() <{level = 10 : i32, message = "bqd,bkd->bqk"}> : () -> ()
    %cst_6 = arith.constant dense<0.000000e+00> : vector<8x8x8xf32>
    %24 = tpu.matmul %15, %19, %cst_6 {dimension_numbers = #tpu.dot_dimension_numbers<[2], [2], [1], [1], [0, 0, 0, 1, 1, 1], [0], [0]>} : vector<8x8x8xbf16>, vector<8x8x8xbf16>, vector<8x8x8xf32> -> vector<8x8x8xf32>
    "tpu.trace_stop"() : () -> ()
    %cst_7 = arith.constant dense<0xFF800000> : vector<8x8xf32>
    %25 = vector.multi_reduction <maximumf>, %24, %cst_7 [2] : vector<8x8x8xf32> to vector<8x8xf32>
    %26 = vector.shape_cast %25 : vector<8x8xf32> to vector<8x8x1xf32>
    %27 = vector.broadcast %26 : vector<8x8x1xf32> to vector<8x8x8xf32>
    %28 = arith.subf %24, %27 : vector<8x8x8xf32>
    %29 = math.exp %28 : vector<8x8x8xf32>
    %cst_8 = arith.constant dense<0.000000e+00> : vector<8x8xf32>
    %30 = vector.multi_reduction <add>, %29, %cst_8 [2] : vector<8x8x8xf32> to vector<8x8xf32>
    %31 = vector.shape_cast %30 : vector<8x8xf32> to vector<8x8x1xf32>
    %32 = tpu.reciprocal %31 {approx = true} : vector<8x8x1xf32> -> vector<8x8x1xf32>
    %33 = vector.broadcast %32 : vector<8x8x1xf32> to vector<8x8x8xf32>
    %34 = arith.mulf %29, %33 : vector<8x8x8xf32>
    %35 = arith.truncf %34 : vector<8x8x8xf32> to vector<8x8x8xbf16>
    "tpu.trace_start"() <{level = 10 : i32, message = "bqk,bkd->bqd"}> : () -> ()
    %cst_9 = arith.constant dense<0.000000e+00> : vector<8x8x8xf32>
    %36 = tpu.matmul %35, %23, %cst_9 {dimension_numbers = #tpu.dot_dimension_numbers<[2], [1], [1], [2], [0, 0, 0, 1, 1, 2], [0], [0]>} : vector<8x8x8xbf16>, vector<8x8x8xbf16>, vector<8x8x8xf32> -> vector<8x8x8xf32>
    "tpu.trace_stop"() : () -> ()
    %37 = vector.shape_cast %36 : vector<8x8x8xf32> to vector<2x4x8x8xf32>
    %38 = tpu.transpose %37, [0, 2, 1, 3] : vector<2x4x8x8xf32> -> vector<2x8x4x8xf32>
    %39 = vector.shape_cast %38 : vector<2x8x4x8xf32> to vector<16x32xf32>
    %40 = arith.truncf %39 : vector<16x32xf32> to vector<16x32xbf16>
    %c0_10 = arith.constant 0 : index
    %c0_11 = arith.constant 0 : index
    %41 = vector.load %arg3[%c0_10, %c0_11] : memref<32x32xbf16, #tpu.memory_space<vmem>>, vector<32x32xbf16>
    %cst_12 = arith.constant dense<0.000000e+00> : vector<16x32xf32>
    %42 = tpu.matmul %40, %41, %cst_12 {dimension_numbers = #tpu.dot_dimension_numbers<[1], [0], [0], [1], [0, 0, 1, 1], [], []>} : vector<16x32xbf16>, vector<32x32xbf16>, vector<16x32xf32> -> vector<16x32xf32>
    %c0_13 = arith.constant 0 : index
    %c0_14 = arith.constant 0 : index
    %43 = vector.load %arg4[%c0_13, %c0_14] : memref<1x32xf32, #tpu.memory_space<vmem>>, vector<1x32xf32>
    %44 = vector.broadcast %43 : vector<1x32xf32> to vector<16x32xf32>
    %45 = arith.addf %42, %44 : vector<16x32xf32>
    %46 = arith.addf %0, %45 : vector<16x32xf32>
    %c0_15 = arith.constant 0 : index
    %c0_16 = arith.constant 0 : index
    %47 = vector.load %arg9[%c0_15, %c0_16] : memref<1x32xf32, #tpu.memory_space<vmem>>, vector<1x32xf32>
    %c0_17 = arith.constant 0 : index
    %c0_18 = arith.constant 0 : index
    %48 = vector.load %arg10[%c0_17, %c0_18] : memref<1x32xf32, #tpu.memory_space<vmem>>, vector<1x32xf32>
    %cst_19 = arith.constant dense<0.000000e+00> : vector<16xf32>
    %49 = vector.multi_reduction <add>, %46, %cst_19 [1] : vector<16x32xf32> to vector<16xf32>
    %50 = vector.shape_cast %49 : vector<16xf32> to vector<16x1xf32>
    %cst_20 = arith.constant 3.200000e+01 : f32
    %51 = vector.broadcast %cst_20 : f32 to vector<16x1xf32>
    %52 = arith.divf %50, %51 : vector<16x1xf32>
    %53 = vector.broadcast %52 : vector<16x1xf32> to vector<16x32xf32>
    %54 = arith.subf %46, %53 : vector<16x32xf32>
    %55 = arith.mulf %54, %54 : vector<16x32xf32>
    %cst_21 = arith.constant dense<0.000000e+00> : vector<16xf32>
    %56 = vector.multi_reduction <add>, %55, %cst_21 [1] : vector<16x32xf32> to vector<16xf32>
    %57 = vector.shape_cast %56 : vector<16xf32> to vector<16x1xf32>
    %cst_22 = arith.constant 3.200000e+01 : f32
    %58 = vector.broadcast %cst_22 : f32 to vector<16x1xf32>
    %59 = arith.divf %57, %58 : vector<16x1xf32>
    %60 = vector.broadcast %52 : vector<16x1xf32> to vector<16x32xf32>
    %61 = arith.subf %46, %60 : vector<16x32xf32>
    %cst_23 = arith.constant 9.99999974E-6 : f32
    %62 = vector.broadcast %cst_23 : f32 to vector<16x1xf32>
    %63 = arith.addf %59, %62 : vector<16x1xf32>
    %64 = math.rsqrt %63 : vector<16x1xf32>
    %65 = vector.broadcast %64 : vector<16x1xf32> to vector<16x32xf32>
    %66 = arith.mulf %61, %65 : vector<16x32xf32>
    %67 = vector.broadcast %47 : vector<1x32xf32> to vector<16x32xf32>
    %68 = arith.mulf %66, %67 : vector<16x32xf32>
    %69 = vector.broadcast %48 : vector<1x32xf32> to vector<16x32xf32>
    %70 = arith.addf %68, %69 : vector<16x32xf32>
    %71 = arith.truncf %70 : vector<16x32xf32> to vector<16x32xbf16>
    %c0_24 = arith.constant 0 : index
    %c0_25 = arith.constant 0 : index
    %72 = vector.load %arg5[%c0_24, %c0_25] : memref<32x128xbf16, #tpu.memory_space<vmem>>, vector<32x128xbf16>
    %cst_26 = arith.constant dense<0.000000e+00> : vector<16x128xf32>
    %73 = tpu.matmul %71, %72, %cst_26 {dimension_numbers = #tpu.dot_dimension_numbers<[1], [0], [0], [1], [0, 0, 1, 1], [], []>} : vector<16x32xbf16>, vector<32x128xbf16>, vector<16x128xf32> -> vector<16x128xf32>
    %c0_27 = arith.constant 0 : index
    %c0_28 = arith.constant 0 : index
    %74 = vector.load %arg6[%c0_27, %c0_28] : memref<1x128xf32, #tpu.memory_space<vmem>>, vector<1x128xf32>
    %75 = vector.broadcast %74 : vector<1x128xf32> to vector<16x128xf32>
    %76 = arith.addf %73, %75 : vector<16x128xf32>
    %cst_29 = arith.constant 0.000000e+00 : f32
    %77 = vector.broadcast %cst_29 : f32 to vector<16x128xf32>
    %78 = arith.maximumf %76, %77 : vector<16x128xf32>
    %79 = arith.truncf %78 : vector<16x128xf32> to vector<16x128xbf16>
    %c0_30 = arith.constant 0 : index
    %c0_31 = arith.constant 0 : index
    %80 = vector.load %arg7[%c0_30, %c0_31] : memref<128x32xbf16, #tpu.memory_space<vmem>>, vector<128x32xbf16>
    %cst_32 = arith.constant dense<0.000000e+00> : vector<16x32xf32>
    %81 = tpu.matmul %79, %80, %cst_32 {dimension_numbers = #tpu.dot_dimension_numbers<[1], [0], [0], [1], [0, 0, 1, 1], [], []>} : vector<16x128xbf16>, vector<128x32xbf16>, vector<16x32xf32> -> vector<16x32xf32>
    %c0_33 = arith.constant 0 : index
    %c0_34 = arith.constant 0 : index
    %82 = vector.load %arg8[%c0_33, %c0_34] : memref<1x32xf32, #tpu.memory_space<vmem>>, vector<1x32xf32>
    %83 = vector.broadcast %82 : vector<1x32xf32> to vector<16x32xf32>
    %84 = arith.addf %81, %83 : vector<16x32xf32>
    %85 = arith.addf %70, %84 : vector<16x32xf32>
    %c0_35 = arith.constant 0 : index
    %c0_36 = arith.constant 0 : index
    %86 = vector.load %arg11[%c0_35, %c0_36] : memref<1x32xf32, #tpu.memory_space<vmem>>, vector<1x32xf32>
    %c0_37 = arith.constant 0 : index
    %c0_38 = arith.constant 0 : index
    %87 = vector.load %arg12[%c0_37, %c0_38] : memref<1x32xf32, #tpu.memory_space<vmem>>, vector<1x32xf32>
    %cst_39 = arith.constant dense<0.000000e+00> : vector<16xf32>
    %88 = vector.multi_reduction <add>, %85, %cst_39 [1] : vector<16x32xf32> to vector<16xf32>
    %89 = vector.shape_cast %88 : vector<16xf32> to vector<16x1xf32>
    %cst_40 = arith.constant 3.200000e+01 : f32
    %90 = vector.broadcast %cst_40 : f32 to vector<16x1xf32>
    %91 = arith.divf %89, %90 : vector<16x1xf32>
    %92 = vector.broadcast %91 : vector<16x1xf32> to vector<16x32xf32>
    %93 = arith.subf %85, %92 : vector<16x32xf32>
    %94 = arith.mulf %93, %93 : vector<16x32xf32>
    %cst_41 = arith.constant dense<0.000000e+00> : vector<16xf32>
    %95 = vector.multi_reduction <add>, %94, %cst_41 [1] : vector<16x32xf32> to vector<16xf32>
    %96 = vector.shape_cast %95 : vector<16xf32> to vector<16x1xf32>
    %cst_42 = arith.constant 3.200000e+01 : f32
    %97 = vector.broadcast %cst_42 : f32 to vector<16x1xf32>
    %98 = arith.divf %96, %97 : vector<16x1xf32>
    %99 = vector.broadcast %91 : vector<16x1xf32> to vector<16x32xf32>
    %100 = arith.subf %85, %99 : vector<16x32xf32>
    %cst_43 = arith.constant 9.99999974E-6 : f32
    %101 = vector.broadcast %cst_43 : f32 to vector<16x1xf32>
    %102 = arith.addf %98, %101 : vector<16x1xf32>
    %103 = math.rsqrt %102 : vector<16x1xf32>
    %104 = vector.broadcast %103 : vector<16x1xf32> to vector<16x32xf32>
    %105 = arith.mulf %100, %104 : vector<16x32xf32>
    %106 = vector.broadcast %86 : vector<1x32xf32> to vector<16x32xf32>
    %107 = arith.mulf %105, %106 : vector<16x32xf32>
    %108 = vector.broadcast %87 : vector<1x32xf32> to vector<16x32xf32>
    %109 = arith.addf %107, %108 : vector<16x32xf32>
    %c0_44 = arith.constant 0 : index
    %c0_45 = arith.constant 0 : index
    %110 = vector.load %arg13[%c0_44, %c0_45] : memref<16x32xf32, #tpu.memory_space<vmem>>, vector<16x32xf32>
    tpu.vector_store %arg13[%c0_44, %c0_45], %109 {strides = array<i32>} : memref<16x32xf32, #tpu.memory_space<vmem>>, vector<16x32xf32>,
    return
  }
}

</mosaic_0001>

<llo_original>
// kernel: tpu_custom_call.1
$region0: #{tpu_custom_call.1}
  #allocation0 [shape = 'u32[]', space=smem, size = 0x4, offset = 0x4, fixed_abs, tag = 'smem constant byte address 0x4 - core index']
  #allocation1 [shape = 'u32[144,128]{1,0:T(1,128)}', space=vmem, size = 0x12000, scoped, tag = 'internal scratch']
  %s0 = inlined_call_operand.vmem [shape: f32[16,32], index: 0, kind: input, shape index: {}]
  %s1 = inlined_call_operand.vmem [shape: bf16[32,96], index: 1, kind: input, shape index: {}]
  %s2 = inlined_call_operand.vmem [shape: f32[1,96], index: 2, kind: input, shape index: {}]
  %s3 = inlined_call_operand.vmem [shape: bf16[32,32], index: 3, kind: input, shape index: {}]
  %s4 = inlined_call_operand.vmem [shape: f32[1,32], index: 4, kind: input, shape index: {}]
  %s5 = inlined_call_operand.vmem [shape: bf16[32,128], index: 5, kind: input, shape index: {}]
  %s6 = inlined_call_operand.vmem [shape: f32[1,128], index: 6, kind: input, shape index: {}]
  %s7 = inlined_call_operand.vmem [shape: bf16[128,32], index: 7, kind: input, shape index: {}]
  %s8 = inlined_call_operand.vmem [shape: f32[1,32], index: 8, kind: input, shape index: {}]
  %s9 = inlined_call_operand.vmem [shape: f32[1,32], index: 9, kind: input, shape index: {}]
  %s10 = inlined_call_operand.vmem [shape: f32[1,32], index: 10, kind: input, shape index: {}]
  %s11 = inlined_call_operand.vmem [shape: f32[1,32], index: 11, kind: input, shape index: {}]
  %s12 = inlined_call_operand.vmem [shape: f32[1,32], index: 12, kind: input, shape index: {}]
  %s13 = inlined_call_operand.hbm [shape: f32[16,32], index: 13, kind: output, shape index: {}]
  %s14 = sld [smem:[#allocation0]]
  $region62: #{tpu_custom_call.1} parent=0
    _
  %s16 = ssub.s32 1, %s14
  %s17 = scalar_select 0, %s16, %s14
  $region1: #{tpu_custom_call.1} parent=0
    #allocation2 [shape = 'u8[8192]{0}', space=vmem, size = 0x2000, scoped, tag = 'output window, operand 0, single buffered']
    #allocation3 [shape = 's32[1]{0}', space=sflag, size = 0x4, scoped, tag = 'scoped memory for tpu_custom_call.1']
    %18 = vsyncpa [#allocation3], 0
    // Predicated region
    $region2: #{tpu_custom_call.1} parent=1 // pred_check
      _
    $region3: #{tpu_custom_call.1} parent=1 // pred_check_branch
      %20 = sbr.rel (0) target = $region5
    $region4: #{tpu_custom_call.1} parent=1 // pred_region
      _
    $region5: #{tpu_custom_call.1} parent=1 // pred_fallthru
      _
    // Predicated region
    $region6: #{tpu_custom_call.1} parent=1 // pred_check
      _
    $region7: #{tpu_custom_call.1} parent=1 // pred_check_branch
      %22 = sbr.rel (0) target = $region9
    $region8: #{tpu_custom_call.1} parent=1 // pred_region
      _
    $region9: #{tpu_custom_call.1} parent=1 // pred_fallthru
      _
    // Predicated region
    $region10: #{tpu_custom_call.1} parent=1 // pred_check
      _
    $region11: #{tpu_custom_call.1} parent=1 // pred_check_branch
      %24 = sbr.rel (0) target = $region13
    $region12: #{tpu_custom_call.1} parent=1 // pred_region
      _
    $region13: #{tpu_custom_call.1} parent=1 // pred_fallthru
      _
    // Predicated region
    $region14: #{tpu_custom_call.1} parent=1 // pred_check
      _
    $region15: #{tpu_custom_call.1} parent=1 // pred_check_branch
      %26 = sbr.rel (0) target = $region17
    $region16: #{tpu_custom_call.1} parent=1 // pred_region
      _
    $region17: #{tpu_custom_call.1} parent=1 // pred_fallthru
      _
    // Predicated region
    $region18: #{tpu_custom_call.1} parent=1 // pred_check
      _
    $region19: #{tpu_custom_call.1} parent=1 // pred_check_branch
      %28 = sbr.rel (0) target = $region21
    $region20: #{tpu_custom_call.1} parent=1 // pred_region
      _
    $region21: #{tpu_custom_call.1} parent=1 // pred_fallthru
      _
    // Predicated region
    $region22: #{tpu_custom_call.1} parent=1 // pred_check
      _
    $region23: #{tpu_custom_call.1} parent=1 // pred_check_branch
      %30 = sbr.rel (0) target = $region25
    $region24: #{tpu_custom_call.1} parent=1 // pred_region
      _
    $region25: #{tpu_custom_call.1} parent=1 // pred_fallthru
      _
    // Predicated region
    $region26: #{tpu_custom_call.1} parent=1 // pred_check
      _
    $region27: #{tpu_custom_call.1} parent=1 // pred_check_branch
      %32 = sbr.rel (0) target = $region29
    $region28: #{tpu_custom_call.1} parent=1 // pred_region
      _
    $region29: #{tpu_custom_call.1} parent=1 // pred_fallthru
      _
    // Predicated region
    $region30: #{tpu_custom_call.1} parent=1 // pred_check
      _
    $region31: #{tpu_custom_call.1} parent=1 // pred_check_branch
      %34 = sbr.rel (0) target = $region33
    $region32: #{tpu_custom_call.1} parent=1 // pred_region
      _
    $region33: #{tpu_custom_call.1} parent=1 // pred_fallthru
      _
    // Predicated region
    $region34: #{tpu_custom_call.1} parent=1 // pred_check
      _
    $region35: #{tpu_custom_call.1} parent=1 // pred_check_branch
      %36 = sbr.rel (0) target = $region37
    $region36: #{tpu_custom_call.1} parent=1 // pred_region
      _
    $region37: #{tpu_custom_call.1} parent=1 // pred_fallthru
      _
    // Predicated region
    $region38: #{tpu_custom_call.1} parent=1 // pred_check
      _
    $region39: #{tpu_custom_call.1} parent=1 // pred_check_branch
      %38 = sbr.rel (0) target = $region41
    $region40: #{tpu_custom_call.1} parent=1 // pred_region
      _
    $region41: #{tpu_custom_call.1} parent=1 // pred_fallthru
      _
    // Predicated region
    $region42: #{tpu_custom_call.1} parent=1 // pred_check
      _
    $region43: #{tpu_custom_call.1} parent=1 // pred_check_branch
      %40 = sbr.rel (0) target = $region45
    $region44: #{tpu_custom_call.1} parent=1 // pred_region
      _
    $region45: #{tpu_custom_call.1} parent=1 // pred_fallthru
      _
    // Predicated region
    $region46: #{tpu_custom_call.1} parent=1 // pred_check
      _
    $region47: #{tpu_custom_call.1} parent=1 // pred_check_branch
      %42 = sbr.rel (0) target = $region49
    $region48: #{tpu_custom_call.1} parent=1 // pred_region
      _
    $region49: #{tpu_custom_call.1} parent=1 // pred_fallthru
      _
    // Predicated region
    $region50: #{tpu_custom_call.1} parent=1 // pred_check
      _
    $region51: #{tpu_custom_call.1} parent=1 // pred_check_branch
      %44 = sbr.rel (0) target = $region53
    $region52: #{tpu_custom_call.1} parent=1 // pred_region
      _
    $region53: #{tpu_custom_call.1} parent=1 // pred_fallthru
      _
    %v46 = vld [vmem:[%s0] sm:$0xff]
    %v47 = vld [vmem:[%s0 + $0x8] sm:$0xff]
    %v48 = vpack.c.bf16 %v47, %v46
    %v49 = vld [vmem:[%s1] sm:$0xf]
    %v50 = vld [vmem:[%s1 + $0x4] sm:$0xf]
    %v51 = vld [vmem:[%s1 + $0x8] sm:$0xf]
    %v52 = vld [vmem:[%s1 + $0xc] sm:$0xf]
    %v53 = vld [vmem:[%s2] sm:$0x1]
    %v55 = vlaneseq
    %v56 = vshrl.u32 %v55, 7
    %v57 = vsub.s32 0, %v56
    %v58 = vrot.slane %v53, %v57
    %v64 = vunpack.c.l.b16 %v49
    %v65 = vunpack.c.l.b16 %v50
    %v66 = vunpack.c.l.b16 %v51
    %v67 = vunpack.c.l.b16 %v52
    %v68 = vpack.c.b16 %v65, %v64
    %v69 = vpack.c.b16 %v67, %v66
    %vm72 = vcmask 261120
    %v74 = vsel %vm72, %v48, 0
    %76 = vmatprep.subr.bf16.mxu0 0
    %77 = vmatpush1.bf16.msra.mxu0 0
    %78 = vmatprep.subr.bf16.mxu0 0
    %79 = vmatpush1.bf16.msra.mxu0 0
    %80 = vmatprep.subr.bf16.mxu0 0
    %81 = vmatpush1.bf16.msra.mxu0 0
    %82 = vmatprep.subr.bf16.mxu0 0
    %83 = vmatpush1.bf16.msra.mxu0 0
    %84 = vmatprep.subr.bf16.mxu0 0
    %85 = vmatpush1.bf16.msra.mxu0 0
    %86 = vmatprep.subr.bf16.mxu0 0
    %87 = vmatpush1.bf16.msra.mxu0 0
    %88 = vmatprep.subr.bf16.mxu0 0
    %89 = vmatpush1.bf16.msra.mxu0 %v69
    %90 = vmatprep.subr.bf16.mxu0 0
    %91 = vmatpush1.bf16.msra.mxu0 %v68
    %92 = vmatprep.subr.bf16.mxu0 0
    %93 = vmatpush2.bf16.msra.mxu0 0
    %94 = vmatprep.subr.bf16.mxu0 0
    %95 = vmatpush2.bf16.msra.mxu0 0
    %96 = vmatprep.subr.bf16.mxu0 0
    %97 = vmatpush2.bf16.msra.mxu0 0
    %98 = vmatprep.subr.bf16.mxu0 0
    %99 = vmatpush2.bf16.msra.mxu0 0
    %100 = vmatprep.subr.bf16.mxu0 0
    %101 = vmatpush2.bf16.msra.mxu0 0
    %102 = vmatprep.subr.bf16.mxu0 0
    %103 = vmatpush2.bf16.msra.mxu0 0
    %104 = vmatprep.subr.bf16.mxu0 0
    %105 = vmatpush2.bf16.msra.mxu0 0
    %106 = vmatprep.subr.bf16.mxu0 0
    %107 = vmatpush2.bf16.msra.mxu0 0
    %108 = vmatprep.mubr.bf16.mxu0 0
    %109 = vmatmul.mubr.bf16.gmra.mxu0 %v74
    %v110 = vpop.f32.mrf.mxu0
    %v111 = vadd.f32 %v58, %v110
    %v112 = vpop.f32.mrf.mxu0
    %v113 = vpop.f32.mrf.mxu0
    %v114 = vadd.f32 %v58, %v113
    %v115 = vpop.f32.mrf.mxu0
    %116 = vdwg.mxu0
    %v117 = vmul.f32 %v111, 0.35355338
    %v118 = vmul.f32 %v114, 0.35355338
    %121 = vrot.lane.b32.xlu0 %v117, 120
    %v122 = vpop.permute.xlu0 %121
    %123 = vrot.lane.b32.xlu0 %v118, 120
    %v124 = vpop.permute.xlu0 %123
    %127 = vrot.lane.b32.xlu0 %v117, 112
    %v128 = vpop.permute.xlu0 %127
    %129 = vrot.lane.b32.xlu0 %v118, 112
    %v130 = vpop.permute.xlu0 %129
    %133 = vrot.lane.b32.xlu0 %v117, 104
    %v134 = vpop.permute.xlu0 %133
    %135 = vrot.lane.b32.xlu0 %v118, 104
    %v136 = vpop.permute.xlu0 %135
    %v139 = vcombine.low %v117, %v128
    %v140 = vcombine.high %v117, %v128
    %v142 = vunpack.c.l.s4 1983009808
    %v143 = vunpack.c.0.s8 %v142
    %v144 = vlaneseq
    %v145 = vshrl.u32 %v144, 7
    %v146 = vsub.s32 %v143, %v145
    %v147 = vrot.slane %v139, %v146
    %v149 = vunpack.c.l.s4 1983009808
    %v150 = vunpack.c.0.s8 %v149
    %v151 = vlaneseq
    %v152 = vshrl.u32 %v151, 7
    %v153 = vsub.s32 %v150, %v152
    %v154 = vrot.slane %v140, %v153
    %v155 = vcombine.low %v122, %v134
    %v156 = vcombine.high %v122, %v134
    %v158 = vunpack.c.l.s4 1983009808
    %v159 = vunpack.c.0.s8 %v158
    %v160 = vlaneseq
    %v161 = vshrl.u32 %v160, 7
    %v162 = vsub.s32 %v159, %v161
    %v163 = vrot.slane %v155, %v162
    %v165 = vunpack.c.l.s4 1983009808
    %v166 = vunpack.c.0.s8 %v165
    %v167 = vlaneseq
    %v168 = vshrl.u32 %v167, 7
    %v169 = vsub.s32 %v166, %v168
    %v170 = vrot.slane %v156, %v169
    %v171 = vcombine.low %v147, %v163
    %v172 = vcombine.high %v147, %v163
    %v174 = vunpack.c.l.s4 1934713408
    %v175 = vunpack.c.0.s8 %v174
    %v176 = vlaneseq
    %v177 = vshrl.u32 %v176, 7
    %v178 = vsub.s32 %v175, %v177
    %v179 = vrot.slane %v171, %v178
    %v181 = vunpack.c.l.s4 1934713408
    %v182 = vunpack.c.0.s8 %v181
    %v183 = vlaneseq
    %v184 = vshrl.u32 %v183, 7
    %v185 = vsub.s32 %v182, %v184
    %v186 = vrot.slane %v172, %v185
    %v187 = vcombine.low %v154, %v170
    %v188 = vcombine.high %v154, %v170
    %v190 = vunpack.c.l.s4 1934713408
    %v191 = vunpack.c.0.s8 %v190
    %v192 = vlaneseq
    %v193 = vshrl.u32 %v192, 7
    %v194 = vsub.s32 %v191, %v193
    %v195 = vrot.slane %v187, %v194
    %v197 = vunpack.c.l.s4 1934713408
    %v198 = vunpack.c.0.s8 %v197
    %v199 = vlaneseq
    %v200 = vshrl.u32 %v199, 7
    %v201 = vsub.s32 %v198, %v200
    %v202 = vrot.slane %v188, %v201
    %v203 = vcombine.high %v179, 0.0
    %v204 = vcombine.high %v186, 0.0
    %v205 = vcombine.high %v195, 0.0
    %v206 = vcombine.high %v202, 0.0
    %v207 = vcombine.low %v118, %v130
    %v208 = vcombine.high %v118, %v130
    %v210 = vunpack.c.l.s4 1983009808
    %v211 = vunpack.c.0.s8 %v210
    %v212 = vlaneseq
    %v213 = vshrl.u32 %v212, 7
    %v214 = vsub.s32 %v211, %v213
    %v215 = vrot.slane %v207, %v214
    %v217 = vunpack.c.l.s4 1983009808
    %v218 = vunpack.c.0.s8 %v217
    %v219 = vlaneseq
    %v220 = vshrl.u32 %v219, 7
    %v221 = vsub.s32 %v218, %v220
    %v222 = vrot.slane %v208, %v221
    %v223 = vcombine.low %v124, %v136
    %v224 = vcombine.high %v124, %v136
    %v226 = vunpack.c.l.s4 1983009808
    %v227 = vunpack.c.0.s8 %v226
    %v228 = vlaneseq
    %v229 = vshrl.u32 %v228, 7
    %v230 = vsub.s32 %v227, %v229
    %v231 = vrot.slane %v223, %v230
    %v233 = vunpack.c.l.s4 1983009808
    %v234 = vunpack.c.0.s8 %v233
    %v235 = vlaneseq
    %v236 = vshrl.u32 %v235, 7
    %v237 = vsub.s32 %v234, %v236
    %v238 = vrot.slane %v224, %v237
    %v239 = vcombine.low %v215, %v231
    %v240 = vcombine.high %v215, %v231
    %v242 = vunpack.c.l.s4 1934713408
    %v243 = vunpack.c.0.s8 %v242
    %v244 = vlaneseq
    %v245 = vshrl.u32 %v244, 7
    %v246 = vsub.s32 %v243, %v245
    %v247 = vrot.slane %v239, %v246
    %v249 = vunpack.c.l.s4 1934713408
    %v250 = vunpack.c.0.s8 %v249
    %v251 = vlaneseq
    %v252 = vshrl.u32 %v251, 7
    %v253 = vsub.s32 %v250, %v252
    %v254 = vrot.slane %v240, %v253
    %v255 = vcombine.low %v222, %v238
    %v256 = vcombine.high %v222, %v238
    %v258 = vunpack.c.l.s4 1934713408
    %v259 = vunpack.c.0.s8 %v258
    %v260 = vlaneseq
    %v261 = vshrl.u32 %v260, 7
    %v262 = vsub.s32 %v259, %v261
    %v263 = vrot.slane %v255, %v262
    %v265 = vunpack.c.l.s4 1934713408
    %v266 = vunpack.c.0.s8 %v265
    %v267 = vlaneseq
    %v268 = vshrl.u32 %v267, 7
    %v269 = vsub.s32 %v266, %v268
    %v270 = vrot.slane %v256, %v269
    %v271 = vcombine.high %v247, 0.0
    %v272 = vcombine.high %v254, 0.0
    %v273 = vcombine.high %v263, 0.0
    %v274 = vcombine.high %v270, 0.0
    %v275 = vcombine.low %v179, %v186
    %v277 = vunpack.c.l.s4 1983009808
    %v278 = vunpack.c.0.s8 %v277
    %v279 = vlaneseq
    %v280 = vshrl.u32 %v279, 7
    %v281 = vsub.s32 %v278, %v280
    %v282 = vrot.slane %v275, %v281
    %v283 = vcombine.low %v203, %v204
    %v285 = vunpack.c.l.s4 1983009808
    %v286 = vunpack.c.0.s8 %v285
    %v287 = vlaneseq
    %v288 = vshrl.u32 %v287, 7
    %v289 = vsub.s32 %v286, %v288
    %v290 = vrot.slane %v283, %v289
    %v291 = vcombine.low %v195, %v202
    %v293 = vunpack.c.l.s4 1983009808
    %v294 = vunpack.c.0.s8 %v293
    %v295 = vlaneseq
    %v296 = vshrl.u32 %v295, 7
    %v297 = vsub.s32 %v294, %v296
    %v298 = vrot.slane %v291, %v297
    %v299 = vcombine.low %v205, %v206
    %v301 = vunpack.c.l.s4 1983009808
    %v302 = vunpack.c.0.s8 %v301
    %v303 = vlaneseq
    %v304 = vshrl.u32 %v303, 7
    %v305 = vsub.s32 %v302, %v304
    %v306 = vrot.slane %v299, %v305
    %v307 = vcombine.low %v282, %v290
    %v308 = vcombine.high %v282, %v290
    %v310 = vunpack.c.l.s4 1934713408
    %v311 = vunpack.c.0.s8 %v310
    %v312 = vlaneseq
    %v313 = vshrl.u32 %v312, 7
    %v314 = vsub.s32 %v311, %v313
    %v315 = vrot.slane %v307, %v314
    %v317 = vunpack.c.l.s4 1934713408
    %v318 = vunpack.c.0.s8 %v317
    %v319 = vlaneseq
    %v320 = vshrl.u32 %v319, 7
    %v321 = vsub.s32 %v318, %v320
    %v322 = vrot.slane %v308, %v321
    %v323 = vcombine.low %v298, %v306
    %v324 = vcombine.high %v298, %v306
    %v326 = vunpack.c.l.s4 1934713408
    %v327 = vunpack.c.0.s8 %v326
    %v328 = vlaneseq
    %v329 = vshrl.u32 %v328, 7
    %v330 = vsub.s32 %v327, %v329
    %v331 = vrot.slane %v323, %v330
    %v333 = vunpack.c.l.s4 1934713408
    %v334 = vunpack.c.0.s8 %v333
    %v335 = vlaneseq
    %v336 = vshrl.u32 %v335, 7
    %v337 = vsub.s32 %v334, %v336
    %v338 = vrot.slane %v324, %v337
    %v339 = vcombine.low %v315, %v331
    %v340 = vcombine.high %v315, %v331
    %v341 = vcombine.low %v322, %v338
    %v342 = vcombine.high %v322, %v338
    %v343 = vcombine.low %v247, %v254
    %v345 = vunpack.c.l.s4 1983009808
    %v346 = vunpack.c.0.s8 %v345
    %v347 = vlaneseq
    %v348 = vshrl.u32 %v347, 7
    %v349 = vsub.s32 %v346, %v348
    %v350 = vrot.slane %v343, %v349
    %v351 = vcombine.low %v271, %v272
    %v353 = vunpack.c.l.s4 1983009808
    %v354 = vunpack.c.0.s8 %v353
    %v355 = vlaneseq
    %v356 = vshrl.u32 %v355, 7
    %v357 = vsub.s32 %v354, %v356
    %v358 = vrot.slane %v351, %v357
    %v359 = vcombine.low %v263, %v270
    %v361 = vunpack.c.l.s4 1983009808
    %v362 = vunpack.c.0.s8 %v361
    %v363 = vlaneseq
    %v364 = vshrl.u32 %v363, 7
    %v365 = vsub.s32 %v362, %v364
    %v366 = vrot.slane %v359, %v365
    %v367 = vcombine.low %v273, %v274
    %v369 = vunpack.c.l.s4 1983009808
    %v370 = vunpack.c.0.s8 %v369
    %v371 = vlaneseq
    %v372 = vshrl.u32 %v371, 7
    %v373 = vsub.s32 %v370, %v372
    %v374 = vrot.slane %v367, %v373
    %v375 = vcombine.low %v350, %v358
    %v376 = vcombine.high %v350, %v358
    %v378 = vunpack.c.l.s4 1934713408
    %v379 = vunpack.c.0.s8 %v378
    %v380 = vlaneseq
    %v381 = vshrl.u32 %v380, 7
    %v382 = vsub.s32 %v379, %v381
    %v383 = vrot.slane %v375, %v382
    %v385 = vunpack.c.l.s4 1934713408
    %v386 = vunpack.c.0.s8 %v385
    %v387 = vlaneseq
    %v388 = vshrl.u32 %v387, 7
    %v389 = vsub.s32 %v386, %v388
    %v390 = vrot.slane %v376, %v389
    %v391 = vcombine.low %v366, %v374
    %v392 = vcombine.high %v366, %v374
    %v394 = vunpack.c.l.s4 1934713408
    %v395 = vunpack.c.0.s8 %v394
    %v396 = vlaneseq
    %v397 = vshrl.u32 %v396, 7
    %v398 = vsub.s32 %v395, %v397
    %v399 = vrot.slane %v391, %v398
    %v401 = vunpack.c.l.s4 1934713408
    %v402 = vunpack.c.0.s8 %v401
    %v403 = vlaneseq
    %v404 = vshrl.u32 %v403, 7
    %v405 = vsub.s32 %v402, %v404
    %v406 = vrot.slane %v392, %v405
    %v407 = vcombine.low %v383, %v399
    %v408 = vcombine.high %v383, %v399
    %v409 = vcombine.low %v390, %v406
    %v410 = vcombine.high %v390, %v406
    %v411 = vpack.c.bf16 %v339, %v339
    %v412 = vpack.c.bf16 %v340, %v340
    %v413 = vpack.c.bf16 %v341, %v341
    %v414 = vpack.c.bf16 %v342, %v342
    %v415 = vpack.c.bf16 %v407, %v407
    %v416 = vpack.c.bf16 %v408, %v408
    %v417 = vpack.c.bf16 %v409, %v409
    %v418 = vpack.c.bf16 %v410, %v410
    %421 = vrot.lane.b32.xlu0 %v111, 120
    %v422 = vpop.permute.xlu0 %421
    %423 = vrot.lane.b32.xlu0 %v114, 120
    %v424 = vpop.permute.xlu0 %423
    %425 = vrot.lane.b32.xlu0 %v111, 112
    %v426 = vpop.permute.xlu0 %425
    %427 = vrot.lane.b32.xlu0 %v114, 112
    %v428 = vpop.permute.xlu0 %427
    %429 = vrot.lane.b32.xlu0 %v111, 104
    %v430 = vpop.permute.xlu0 %429
    %431 = vrot.lane.b32.xlu0 %v114, 104
    %v432 = vpop.permute.xlu0 %431
    %433 = vrot.lane.b32.xlu0 %v111, 96
    %v434 = vpop.permute.xlu0 %433
    %435 = vrot.lane.b32.xlu0 %v114, 96
    %v436 = vpop.permute.xlu0 %435
    %437 = vrot.lane.b32.xlu0 %v422, 96
    %v438 = vpop.permute.xlu0 %437
    %439 = vrot.lane.b32.xlu0 %v424, 96
    %v440 = vpop.permute.xlu0 %439
    %441 = vrot.lane.b32.xlu0 %v426, 96
    %v442 = vpop.permute.xlu0 %441
    %443 = vrot.lane.b32.xlu0 %v428, 96
    %v444 = vpop.permute.xlu0 %443
    %445 = vrot.lane.b32.xlu0 %v430, 96
    %v446 = vpop.permute.xlu0 %445
    %447 = vrot.lane.b32.xlu0 %v432, 96
    %v448 = vpop.permute.xlu0 %447
    %v457 = vcombine.low %v434, %v442
    %v458 = vcombine.high %v434, %v442
    %v460 = vunpack.c.l.s4 1983009808
    %v461 = vunpack.c.0.s8 %v460
    %v462 = vlaneseq
    %v463 = vshrl.u32 %v462, 7
    %v464 = vsub.s32 %v461, %v463
    %v465 = vrot.slane %v457, %v464
    %v467 = vunpack.c.l.s4 1983009808
    %v468 = vunpack.c.0.s8 %v467
    %v469 = vlaneseq
    %v470 = vshrl.u32 %v469, 7
    %v471 = vsub.s32 %v468, %v470
    %v472 = vrot.slane %v458, %v471
    %v473 = vcombine.low %v438, %v446
    %v474 = vcombine.high %v438, %v446
    %v476 = vunpack.c.l.s4 1983009808
    %v477 = vunpack.c.0.s8 %v476
    %v478 = vlaneseq
    %v479 = vshrl.u32 %v478, 7
    %v480 = vsub.s32 %v477, %v479
    %v481 = vrot.slane %v473, %v480
    %v483 = vunpack.c.l.s4 1983009808
    %v484 = vunpack.c.0.s8 %v483
    %v485 = vlaneseq
    %v486 = vshrl.u32 %v485, 7
    %v487 = vsub.s32 %v484, %v486
    %v488 = vrot.slane %v474, %v487
    %v489 = vcombine.low %v465, %v481
    %v490 = vcombine.high %v465, %v481
    %v492 = vunpack.c.l.s4 1934713408
    %v493 = vunpack.c.0.s8 %v492
    %v494 = vlaneseq
    %v495 = vshrl.u32 %v494, 7
    %v496 = vsub.s32 %v493, %v495
    %v497 = vrot.slane %v489, %v496
    %v499 = vunpack.c.l.s4 1934713408
    %v500 = vunpack.c.0.s8 %v499
    %v501 = vlaneseq
    %v502 = vshrl.u32 %v501, 7
    %v503 = vsub.s32 %v500, %v502
    %v504 = vrot.slane %v490, %v503
    %v505 = vcombine.low %v472, %v488
    %v506 = vcombine.high %v472, %v488
    %v508 = vunpack.c.l.s4 1934713408
    %v509 = vunpack.c.0.s8 %v508
    %v510 = vlaneseq
    %v511 = vshrl.u32 %v510, 7
    %v512 = vsub.s32 %v509, %v511
    %v513 = vrot.slane %v505, %v512
    %v515 = vunpack.c.l.s4 1934713408
    %v516 = vunpack.c.0.s8 %v515
    %v517 = vlaneseq
    %v518 = vshrl.u32 %v517, 7
    %v519 = vsub.s32 %v516, %v518
    %v520 = vrot.slane %v506, %v519
    %v521 = vcombine.high %v497, 0.0
    %v522 = vcombine.high %v504, 0.0
    %v523 = vcombine.high %v513, 0.0
    %v524 = vcombine.high %v520, 0.0
    %v525 = vcombine.low %v436, %v444
    %v526 = vcombine.high %v436, %v444
    %v528 = vunpack.c.l.s4 1983009808
    %v529 = vunpack.c.0.s8 %v528
    %v530 = vlaneseq
    %v531 = vshrl.u32 %v530, 7
    %v532 = vsub.s32 %v529, %v531
    %v533 = vrot.slane %v525, %v532
    %v535 = vunpack.c.l.s4 1983009808
    %v536 = vunpack.c.0.s8 %v535
    %v537 = vlaneseq
    %v538 = vshrl.u32 %v537, 7
    %v539 = vsub.s32 %v536, %v538
    %v540 = vrot.slane %v526, %v539
    %v541 = vcombine.low %v440, %v448
    %v542 = vcombine.high %v440, %v448
    %v544 = vunpack.c.l.s4 1983009808
    %v545 = vunpack.c.0.s8 %v544
    %v546 = vlaneseq
    %v547 = vshrl.u32 %v546, 7
    %v548 = vsub.s32 %v545, %v547
    %v549 = vrot.slane %v541, %v548
    %v551 = vunpack.c.l.s4 1983009808
    %v552 = vunpack.c.0.s8 %v551
    %v553 = vlaneseq
    %v554 = vshrl.u32 %v553, 7
    %v555 = vsub.s32 %v552, %v554
    %v556 = vrot.slane %v542, %v555
    %v557 = vcombine.low %v533, %v549
    %v558 = vcombine.high %v533, %v549
    %v560 = vunpack.c.l.s4 1934713408
    %v561 = vunpack.c.0.s8 %v560
    %v562 = vlaneseq
    %v563 = vshrl.u32 %v562, 7
    %v564 = vsub.s32 %v561, %v563
    %v565 = vrot.slane %v557, %v564
    %v567 = vunpack.c.l.s4 1934713408
    %v568 = vunpack.c.0.s8 %v567
    %v569 = vlaneseq
    %v570 = vshrl.u32 %v569, 7
    %v571 = vsub.s32 %v568, %v570
    %v572 = vrot.slane %v558, %v571
    %v573 = vcombine.low %v540, %v556
    %v574 = vcombine.high %v540, %v556
    %v576 = vunpack.c.l.s4 1934713408
    %v577 = vunpack.c.0.s8 %v576
    %v578 = vlaneseq
    %v579 = vshrl.u32 %v578, 7
    %v580 = vsub.s32 %v577, %v579
    %v581 = vrot.slane %v573, %v580
    %v583 = vunpack.c.l.s4 1934713408
    %v584 = vunpack.c.0.s8 %v583
    %v585 = vlaneseq
    %v586 = vshrl.u32 %v585, 7
    %v587 = vsub.s32 %v584, %v586
    %v588 = vrot.slane %v574, %v587
    %v589 = vcombine.high %v565, 0.0
    %v590 = vcombine.high %v572, 0.0
    %v591 = vcombine.high %v581, 0.0
    %v592 = vcombine.high %v588, 0.0
    %v593 = vcombine.low %v497, %v504
    %v595 = vunpack.c.l.s4 1983009808
    %v596 = vunpack.c.0.s8 %v595
    %v597 = vlaneseq
    %v598 = vshrl.u32 %v597, 7
    %v599 = vsub.s32 %v596, %v598
    %v600 = vrot.slane %v593, %v599
    %v601 = vcombine.low %v521, %v522
    %v603 = vunpack.c.l.s4 1983009808
    %v604 = vunpack.c.0.s8 %v603
    %v605 = vlaneseq
    %v606 = vshrl.u32 %v605, 7
    %v607 = vsub.s32 %v604, %v606
    %v608 = vrot.slane %v601, %v607
    %v609 = vcombine.low %v513, %v520
    %v611 = vunpack.c.l.s4 1983009808
    %v612 = vunpack.c.0.s8 %v611
    %v613 = vlaneseq
    %v614 = vshrl.u32 %v613, 7
    %v615 = vsub.s32 %v612, %v614
    %v616 = vrot.slane %v609, %v615
    %v617 = vcombine.low %v523, %v524
    %v619 = vunpack.c.l.s4 1983009808
    %v620 = vunpack.c.0.s8 %v619
    %v621 = vlaneseq
    %v622 = vshrl.u32 %v621, 7
    %v623 = vsub.s32 %v620, %v622
    %v624 = vrot.slane %v617, %v623
    %v625 = vcombine.low %v600, %v608
    %v626 = vcombine.high %v600, %v608
    %v628 = vunpack.c.l.s4 1934713408
    %v629 = vunpack.c.0.s8 %v628
    %v630 = vlaneseq
    %v631 = vshrl.u32 %v630, 7
    %v632 = vsub.s32 %v629, %v631
    %v633 = vrot.slane %v625, %v632
    %v635 = vunpack.c.l.s4 1934713408
    %v636 = vunpack.c.0.s8 %v635
    %v637 = vlaneseq
    %v638 = vshrl.u32 %v637, 7
    %v639 = vsub.s32 %v636, %v638
    %v640 = vrot.slane %v626, %v639
    %v641 = vcombine.low %v616, %v624
    %v642 = vcombine.high %v616, %v624
    %v644 = vunpack.c.l.s4 1934713408
    %v645 = vunpack.c.0.s8 %v644
    %v646 = vlaneseq
    %v647 = vshrl.u32 %v646, 7
    %v648 = vsub.s32 %v645, %v647
    %v649 = vrot.slane %v641, %v648
    %v651 = vunpack.c.l.s4 1934713408
    %v652 = vunpack.c.0.s8 %v651
    %v653 = vlaneseq
    %v654 = vshrl.u32 %v653, 7
    %v655 = vsub.s32 %v652, %v654
    %v656 = vrot.slane %v642, %v655
    %v657 = vcombine.low %v633, %v649
    %v658 = vcombine.high %v633, %v649
    %v659 = vcombine.low %v640, %v656
    %v660 = vcombine.high %v640, %v656
    %v661 = vcombine.low %v565, %v572
    %v663 = vunpack.c.l.s4 1983009808
    %v664 = vunpack.c.0.s8 %v663
    %v665 = vlaneseq
    %v666 = vshrl.u32 %v665, 7
    %v667 = vsub.s32 %v664, %v666
    %v668 = vrot.slane %v661, %v667
    %v669 = vcombine.low %v589, %v590
    %v671 = vunpack.c.l.s4 1983009808
    %v672 = vunpack.c.0.s8 %v671
    %v673 = vlaneseq
    %v674 = vshrl.u32 %v673, 7
    %v675 = vsub.s32 %v672, %v674
    %v676 = vrot.slane %v669, %v675
    %v677 = vcombine.low %v581, %v588
    %v679 = vunpack.c.l.s4 1983009808
    %v680 = vunpack.c.0.s8 %v679
    %v681 = vlaneseq
    %v682 = vshrl.u32 %v681, 7
    %v683 = vsub.s32 %v680, %v682
    %v684 = vrot.slane %v677, %v683
    %v685 = vcombine.low %v591, %v592
    %v687 = vunpack.c.l.s4 1983009808
    %v688 = vunpack.c.0.s8 %v687
    %v689 = vlaneseq
    %v690 = vshrl.u32 %v689, 7
    %v691 = vsub.s32 %v688, %v690
    %v692 = vrot.slane %v685, %v691
    %v693 = vcombine.low %v668, %v676
    %v694 = vcombine.high %v668, %v676
    %v696 = vunpack.c.l.s4 1934713408
    %v697 = vunpack.c.0.s8 %v696
    %v698 = vlaneseq
    %v699 = vshrl.u32 %v698, 7
    %v700 = vsub.s32 %v697, %v699
    %v701 = vrot.slane %v693, %v700
    %v703 = vunpack.c.l.s4 1934713408
    %v704 = vunpack.c.0.s8 %v703
    %v705 = vlaneseq
    %v706 = vshrl.u32 %v705, 7
    %v707 = vsub.s32 %v704, %v706
    %v708 = vrot.slane %v694, %v707
    %v709 = vcombine.low %v684, %v692
    %v710 = vcombine.high %v684, %v692
    %v712 = vunpack.c.l.s4 1934713408
    %v713 = vunpack.c.0.s8 %v712
    %v714 = vlaneseq
    %v715 = vshrl.u32 %v714, 7
    %v716 = vsub.s32 %v713, %v715
    %v717 = vrot.slane %v709, %v716
    %v719 = vunpack.c.l.s4 1934713408
    %v720 = vunpack.c.0.s8 %v719
    %v721 = vlaneseq
    %v722 = vshrl.u32 %v721, 7
    %v723 = vsub.s32 %v720, %v722
    %v724 = vrot.slane %v710, %v723
    %v725 = vcombine.low %v701, %v717
    %v726 = vcombine.high %v701, %v717
    %v727 = vcombine.low %v708, %v724
    %v728 = vcombine.high %v708, %v724
    %v729 = vpack.c.bf16 %v657, %v657
    %v730 = vpack.c.bf16 %v658, %v658
    %v731 = vpack.c.bf16 %v659, %v659
    %v732 = vpack.c.bf16 %v660, %v660
    %v733 = vpack.c.bf16 %v725, %v725
    %v734 = vpack.c.bf16 %v726, %v726
    %v735 = vpack.c.bf16 %v727, %v727
    %v736 = vpack.c.bf16 %v728, %v728
    %737 = vrot.lane.b32.xlu0 %v111, 64
    %v738 = vpop.permute.xlu0 %737
    %739 = vrot.lane.b32.xlu0 %v114, 64
    %v740 = vpop.permute.xlu0 %739
    %741 = vrot.lane.b32.xlu0 %v422, 64
    %v742 = vpop.permute.xlu0 %741
    %743 = vrot.lane.b32.xlu0 %v424, 64
    %v744 = vpop.permute.xlu0 %743
    %745 = vrot.lane.b32.xlu0 %v426, 64
    %v746 = vpop.permute.xlu0 %745
    %747 = vrot.lane.b32.xlu0 %v428, 64
    %v748 = vpop.permute.xlu0 %747
    %749 = vrot.lane.b32.xlu0 %v430, 64
    %v750 = vpop.permute.xlu0 %749
    %751 = vrot.lane.b32.xlu0 %v432, 64
    %v752 = vpop.permute.xlu0 %751
    %v761 = vcombine.low %v738, %v746
    %v762 = vcombine.high %v738, %v746
    %v764 = vunpack.c.l.s4 1983009808
    %v765 = vunpack.c.0.s8 %v764
    %v766 = vlaneseq
    %v767 = vshrl.u32 %v766, 7
    %v768 = vsub.s32 %v765, %v767
    %v769 = vrot.slane %v761, %v768
    %v771 = vunpack.c.l.s4 1983009808
    %v772 = vunpack.c.0.s8 %v771
    %v773 = vlaneseq
    %v774 = vshrl.u32 %v773, 7
    %v775 = vsub.s32 %v772, %v774
    %v776 = vrot.slane %v762, %v775
    %v777 = vcombine.low %v742, %v750
    %v778 = vcombine.high %v742, %v750
    %v780 = vunpack.c.l.s4 1983009808
    %v781 = vunpack.c.0.s8 %v780
    %v782 = vlaneseq
    %v783 = vshrl.u32 %v782, 7
    %v784 = vsub.s32 %v781, %v783
    %v785 = vrot.slane %v777, %v784
    %v787 = vunpack.c.l.s4 1983009808
    %v788 = vunpack.c.0.s8 %v787
    %v789 = vlaneseq
    %v790 = vshrl.u32 %v789, 7
    %v791 = vsub.s32 %v788, %v790
    %v792 = vrot.slane %v778, %v791
    %v793 = vcombine.low %v769, %v785
    %v794 = vcombine.high %v769, %v785
    %v796 = vunpack.c.l.s4 1934713408
    %v797 = vunpack.c.0.s8 %v796
    %v798 = vlaneseq
    %v799 = vshrl.u32 %v798, 7
    %v800 = vsub.s32 %v797, %v799
    %v801 = vrot.slane %v793, %v800
    %v803 = vunpack.c.l.s4 1934713408
    %v804 = vunpack.c.0.s8 %v803
    %v805 = vlaneseq
    %v806 = vshrl.u32 %v805, 7
    %v807 = vsub.s32 %v804, %v806
    %v808 = vrot.slane %v794, %v807
    %v809 = vcombine.low %v776, %v792
    %v810 = vcombine.high %v776, %v792
    %v812 = vunpack.c.l.s4 1934713408
    %v813 = vunpack.c.0.s8 %v812
    %v814 = vlaneseq
    %v815 = vshrl.u32 %v814, 7
    %v816 = vsub.s32 %v813, %v815
    %v817 = vrot.slane %v809, %v816
    %v819 = vunpack.c.l.s4 1934713408
    %v820 = vunpack.c.0.s8 %v819
    %v821 = vlaneseq
    %v822 = vshrl.u32 %v821, 7
    %v823 = vsub.s32 %v820, %v822
    %v824 = vrot.slane %v810, %v823
    %v825 = vcombine.high %v801, 0.0
    %v826 = vcombine.high %v808, 0.0
    %v827 = vcombine.high %v817, 0.0
    %v828 = vcombine.high %v824, 0.0
    %v829 = vcombine.low %v740, %v748
    %v830 = vcombine.high %v740, %v748
    %v832 = vunpack.c.l.s4 1983009808
    %v833 = vunpack.c.0.s8 %v832
    %v834 = vlaneseq
    %v835 = vshrl.u32 %v834, 7
    %v836 = vsub.s32 %v833, %v835
    %v837 = vrot.slane %v829, %v836
    %v839 = vunpack.c.l.s4 1983009808
    %v840 = vunpack.c.0.s8 %v839
    %v841 = vlaneseq
    %v842 = vshrl.u32 %v841, 7
    %v843 = vsub.s32 %v840, %v842
    %v844 = vrot.slane %v830, %v843
    %v845 = vcombine.low %v744, %v752
    %v846 = vcombine.high %v744, %v752
    %v848 = vunpack.c.l.s4 1983009808
    %v849 = vunpack.c.0.s8 %v848
    %v850 = vlaneseq
    %v851 = vshrl.u32 %v850, 7
    %v852 = vsub.s32 %v849, %v851
    %v853 = vrot.slane %v845, %v852
    %v855 = vunpack.c.l.s4 1983009808
    %v856 = vunpack.c.0.s8 %v855
    %v857 = vlaneseq
    %v858 = vshrl.u32 %v857, 7
    %v859 = vsub.s32 %v856, %v858
    %v860 = vrot.slane %v846, %v859
    %v861 = vcombine.low %v837, %v853
    %v862 = vcombine.high %v837, %v853
    %v864 = vunpack.c.l.s4 1934713408
    %v865 = vunpack.c.0.s8 %v864
    %v866 = vlaneseq
    %v867 = vshrl.u32 %v866, 7
    %v868 = vsub.s32 %v865, %v867
    %v869 = vrot.slane %v861, %v868
    %v871 = vunpack.c.l.s4 1934713408
    %v872 = vunpack.c.0.s8 %v871
    %v873 = vlaneseq
    %v874 = vshrl.u32 %v873, 7
    %v875 = vsub.s32 %v872, %v874
    %v876 = vrot.slane %v862, %v875
    %v877 = vcombine.low %v844, %v860
    %v878 = vcombine.high %v844, %v860
    %v880 = vunpack.c.l.s4 1934713408
    %v881 = vunpack.c.0.s8 %v880
    %v882 = vlaneseq
    %v883 = vshrl.u32 %v882, 7
    %v884 = vsub.s32 %v881, %v883
    %v885 = vrot.slane %v877, %v884
    %v887 = vunpack.c.l.s4 1934713408
    %v888 = vunpack.c.0.s8 %v887
    %v889 = vlaneseq
    %v890 = vshrl.u32 %v889, 7
    %v891 = vsub.s32 %v888, %v890
    %v892 = vrot.slane %v878, %v891
    %v893 = vcombine.high %v869, 0.0
    %v894 = vcombine.high %v876, 0.0
    %v895 = vcombine.high %v885, 0.0
    %v896 = vcombine.high %v892, 0.0
    %v897 = vcombine.low %v801, %v808
    %v899 = vunpack.c.l.s4 1983009808
    %v900 = vunpack.c.0.s8 %v899
    %v901 = vlaneseq
    %v902 = vshrl.u32 %v901, 7
    %v903 = vsub.s32 %v900, %v902
    %v904 = vrot.slane %v897, %v903
    %v905 = vcombine.low %v825, %v826
    %v907 = vunpack.c.l.s4 1983009808
    %v908 = vunpack.c.0.s8 %v907
    %v909 = vlaneseq
    %v910 = vshrl.u32 %v909, 7
    %v911 = vsub.s32 %v908, %v910
    %v912 = vrot.slane %v905, %v911
    %v913 = vcombine.low %v817, %v824
    %v915 = vunpack.c.l.s4 1983009808
    %v916 = vunpack.c.0.s8 %v915
    %v917 = vlaneseq
    %v918 = vshrl.u32 %v917, 7
    %v919 = vsub.s32 %v916, %v918
    %v920 = vrot.slane %v913, %v919
    %v921 = vcombine.low %v827, %v828
    %v923 = vunpack.c.l.s4 1983009808
    %v924 = vunpack.c.0.s8 %v923
    %v925 = vlaneseq
    %v926 = vshrl.u32 %v925, 7
    %v927 = vsub.s32 %v924, %v926
    %v928 = vrot.slane %v921, %v927
    %v929 = vcombine.low %v904, %v912
    %v930 = vcombine.high %v904, %v912
    %v932 = vunpack.c.l.s4 1934713408
    %v933 = vunpack.c.0.s8 %v932
    %v934 = vlaneseq
    %v935 = vshrl.u32 %v934, 7
    %v936 = vsub.s32 %v933, %v935
    %v937 = vrot.slane %v929, %v936
    %v939 = vunpack.c.l.s4 1934713408
    %v940 = vunpack.c.0.s8 %v939
    %v941 = vlaneseq
    %v942 = vshrl.u32 %v941, 7
    %v943 = vsub.s32 %v940, %v942
    %v944 = vrot.slane %v930, %v943
    %v945 = vcombine.low %v920, %v928
    %v946 = vcombine.high %v920, %v928
    %v948 = vunpack.c.l.s4 1934713408
    %v949 = vunpack.c.0.s8 %v948
    %v950 = vlaneseq
    %v951 = vshrl.u32 %v950, 7
    %v952 = vsub.s32 %v949, %v951
    %v953 = vrot.slane %v945, %v952
    %v955 = vunpack.c.l.s4 1934713408
    %v956 = vunpack.c.0.s8 %v955
    %v957 = vlaneseq
    %v958 = vshrl.u32 %v957, 7
    %v959 = vsub.s32 %v956, %v958
    %v960 = vrot.slane %v946, %v959
    %v961 = vcombine.low %v937, %v953
    %v962 = vcombine.high %v937, %v953
    %v963 = vcombine.low %v944, %v960
    %v964 = vcombine.high %v944, %v960
    %v965 = vcombine.low %v869, %v876
    %v967 = vunpack.c.l.s4 1983009808
    %v968 = vunpack.c.0.s8 %v967
    %v969 = vlaneseq
    %v970 = vshrl.u32 %v969, 7
    %v971 = vsub.s32 %v968, %v970
    %v972 = vrot.slane %v965, %v971
    %v973 = vcombine.low %v893, %v894
    %v975 = vunpack.c.l.s4 1983009808
    %v976 = vunpack.c.0.s8 %v975
    %v977 = vlaneseq
    %v978 = vshrl.u32 %v977, 7
    %v979 = vsub.s32 %v976, %v978
    %v980 = vrot.slane %v973, %v979
    %v981 = vcombine.low %v885, %v892
    %v983 = vunpack.c.l.s4 1983009808
    %v984 = vunpack.c.0.s8 %v983
    %v985 = vlaneseq
    %v986 = vshrl.u32 %v985, 7
    %v987 = vsub.s32 %v984, %v986
    %v988 = vrot.slane %v981, %v987
    %v989 = vcombine.low %v895, %v896
    %v991 = vunpack.c.l.s4 1983009808
    %v992 = vunpack.c.0.s8 %v991
    %v993 = vlaneseq
    %v994 = vshrl.u32 %v993, 7
    %v995 = vsub.s32 %v992, %v994
    %v996 = vrot.slane %v989, %v995
    %v997 = vcombine.low %v972, %v980
    %v998 = vcombine.high %v972, %v980
    %v1000 = vunpack.c.l.s4 1934713408
    %v1001 = vunpack.c.0.s8 %v1000
    %v1002 = vlaneseq
    %v1003 = vshrl.u32 %v1002, 7
    %v1004 = vsub.s32 %v1001, %v1003
    %v1005 = vrot.slane %v997, %v1004
    %v1007 = vunpack.c.l.s4 1934713408
    %v1008 = vunpack.c.0.s8 %v1007
    %v1009 = vlaneseq
    %v1010 = vshrl.u32 %v1009, 7
    %v1011 = vsub.s32 %v1008, %v1010
    %v1012 = vrot.slane %v998, %v1011
    %v1013 = vcombine.low %v988, %v996
    %v1014 = vcombine.high %v988, %v996
    %v1016 = vunpack.c.l.s4 1934713408
    %v1017 = vunpack.c.0.s8 %v1016
    %v1018 = vlaneseq
    %v1019 = vshrl.u32 %v1018, 7
    %v1020 = vsub.s32 %v1017, %v1019
    %v1021 = vrot.slane %v1013, %v1020
    %v1023 = vunpack.c.l.s4 1934713408
    %v1024 = vunpack.c.0.s8 %v1023
    %v1025 = vlaneseq
    %v1026 = vshrl.u32 %v1025, 7
    %v1027 = vsub.s32 %v1024, %v1026
    %v1028 = vrot.slane %v1014, %v1027
    %v1029 = vcombine.low %v1005, %v1021
    %v1030 = vcombine.high %v1005, %v1021
    %v1031 = vcombine.low %v1012, %v1028
    %v1032 = vcombine.high %v1012, %v1028
    %v1033 = vpack.c.bf16 %v961, %v961
    %v1034 = vpack.c.bf16 %v962, %v962
    %v1035 = vpack.c.bf16 %v963, %v963
    %v1036 = vpack.c.bf16 %v964, %v964
    %v1037 = vpack.c.bf16 %v1029, %v1029
    %v1038 = vpack.c.bf16 %v1030, %v1030
    %v1039 = vpack.c.bf16 %v1031, %v1031
    %v1040 = vpack.c.bf16 %v1032, %v1032
    %vm1041 = vcmask 64512
    %v1043 = vsel %vm1041, %v411, 0
    %v1046 = vsel %vm1041, %v729, 0
    %1048 = vmatprep.subr.bf16.mxu0 0
    %1049 = vmatpush1.bf16.xpose.msra.mxu0 0
    %1050 = vmatprep.subr.bf16.mxu0 0
    %1051 = vmatpush1.bf16.xpose.msra.mxu0 0
    %1052 = vmatprep.subr.bf16.mxu0 0
    %1053 = vmatpush1.bf16.xpose.msra.mxu0 0
    %1054 = vmatprep.subr.bf16.mxu0 0
    %1055 = vmatpush1.bf16.xpose.msra.mxu0 0
    %1056 = vmatprep.subr.bf16.mxu0 0
    %1057 = vmatpush1.bf16.xpose.msra.mxu0 0
    %1058 = vmatprep.subr.bf16.mxu0 0
    %1059 = vmatpush1.bf16.xpose.msra.mxu0 0
    %1060 = vmatprep.subr.bf16.mxu0 0
    %1061 = vmatpush1.bf16.xpose.msra.mxu0 0
    %1062 = vmatprep.subr.bf16.mxu0 0
    %1063 = vmatpush1.bf16.xpose.msra.mxu0 %v1046
    %1064 = vmatprep.subr.bf16.mxu0 0
    %1065 = vmatpush2.bf16.xpose.msra.mxu0 0
    %1066 = vmatprep.subr.bf16.mxu0 0
    %1067 = vmatpush2.bf16.xpose.msra.mxu0 0
    %1068 = vmatprep.subr.bf16.mxu0 0
    %1069 = vmatpush2.bf16.xpose.msra.mxu0 0
    %1070 = vmatprep.subr.bf16.mxu0 0
    %1071 = vmatpush2.bf16.xpose.msra.mxu0 0
    %1072 = vmatprep.subr.bf16.mxu0 0
    %1073 = vmatpush2.bf16.xpose.msra.mxu0 0
    %1074 = vmatprep.subr.bf16.mxu0 0
    %1075 = vmatpush2.bf16.xpose.msra.mxu0 0
    %1076 = vmatprep.subr.bf16.mxu0 0
    %1077 = vmatpush2.bf16.xpose.msra.mxu0 0
    %1078 = vmatprep.subr.bf16.mxu0 0
    %1079 = vmatpush2.bf16.xpose.msra.mxu0 0
    %1080 = vmatprep.mubr.bf16.mxu0 0
    %1081 = vmatmul.mubr.bf16.gmra.mxu0 %v1043
    %v1082 = vpop.f32.mrf.mxu0
    %v1083 = vadd.f32 0.0, %v1082
    %v1084 = vpop.f32.mrf.mxu0
    %v1085 = vpop.f32.mrf.mxu0
    %v1086 = vpop.f32.mrf.mxu0
    %1087 = vdwg.mxu0
    %v1089 = vsel %vm1041, %v412, 0
    %v1092 = vsel %vm1041, %v730, 0
    %1094 = vmatprep.subr.bf16.mxu0 0
    %1095 = vmatpush1.bf16.xpose.msra.mxu0 0
    %1096 = vmatprep.subr.bf16.mxu0 0
    %1097 = vmatpush1.bf16.xpose.msra.mxu0 0
    %1098 = vmatprep.subr.bf16.mxu0 0
    %1099 = vmatpush1.bf16.xpose.msra.mxu0 0
    %1100 = vmatprep.subr.bf16.mxu0 0
    %1101 = vmatpush1.bf16.xpose.msra.mxu0 0
    %1102 = vmatprep.subr.bf16.mxu0 0
    %1103 = vmatpush1.bf16.xpose.msra.mxu0 0
    %1104 = vmatprep.subr.bf16.mxu0 0
    %1105 = vmatpush1.bf16.xpose.msra.mxu0 0
    %1106 = vmatprep.subr.bf16.mxu0 0
    %1107 = vmatpush1.bf16.xpose.msra.mxu0 0
    %1108 = vmatprep.subr.bf16.mxu0 0
    %1109 = vmatpush1.bf16.xpose.msra.mxu0 %v1092
    %1110 = vmatprep.subr.bf16.mxu0 0
    %1111 = vmatpush2.bf16.xpose.msra.mxu0 0
    %1112 = vmatprep.subr.bf16.mxu0 0
    %1113 = vmatpush2.bf16.xpose.msra.mxu0 0
    %1114 = vmatprep.subr.bf16.mxu0 0
    %1115 = vmatpush2.bf16.xpose.msra.mxu0 0
    %1116 = vmatprep.subr.bf16.mxu0 0
    %1117 = vmatpush2.bf16.xpose.msra.mxu0 0
    %1118 = vmatprep.subr.bf16.mxu0 0
    %1119 = vmatpush2.bf16.xpose.msra.mxu0 0
    %1120 = vmatprep.subr.bf16.mxu0 0
    %1121 = vmatpush2.bf16.xpose.msra.mxu0 0
    %1122 = vmatprep.subr.bf16.mxu0 0
    %1123 = vmatpush2.bf16.xpose.msra.mxu0 0
    %1124 = vmatprep.subr.bf16.mxu0 0
    %1125 = vmatpush2.bf16.xpose.msra.mxu0 0
    %1126 = vmatprep.mubr.bf16.mxu0 0
    %1127 = vmatmul.mubr.bf16.gmra.mxu0 %v1089
    %v1128 = vpop.f32.mrf.mxu0
    %v1129 = vadd.f32 0.0, %v1128
    %v1130 = vpop.f32.mrf.mxu0
    %v1131 = vpop.f32.mrf.mxu0
    %v1132 = vpop.f32.mrf.mxu0
    %1133 = vdwg.mxu0
    %v1135 = vsel %vm1041, %v413, 0
    %v1138 = vsel %vm1041, %v731, 0
    %1140 = vmatprep.subr.bf16.mxu0 0
    %1141 = vmatpush1.bf16.xpose.msra.mxu0 0
    %1142 = vmatprep.subr.bf16.mxu0 0
    %1143 = vmatpush1.bf16.xpose.msra.mxu0 0
    %1144 = vmatprep.subr.bf16.mxu0 0
    %1145 = vmatpush1.bf16.xpose.msra.mxu0 0
    %1146 = vmatprep.subr.bf16.mxu0 0
    %1147 = vmatpush1.bf16.xpose.msra.mxu0 0
    %1148 = vmatprep.subr.bf16.mxu0 0
    %1149 = vmatpush1.bf16.xpose.msra.mxu0 0
    %1150 = vmatprep.subr.bf16.mxu0 0
    %1151 = vmatpush1.bf16.xpose.msra.mxu0 0
    %1152 = vmatprep.subr.bf16.mxu0 0
    %1153 = vmatpush1.bf16.xpose.msra.mxu0 0
    %1154 = vmatprep.subr.bf16.mxu0 0
    %1155 = vmatpush1.bf16.xpose.msra.mxu0 %v1138
    %1156 = vmatprep.subr.bf16.mxu0 0
    %1157 = vmatpush2.bf16.xpose.msra.mxu0 0
    %1158 = vmatprep.subr.bf16.mxu0 0
    %1159 = vmatpush2.bf16.xpose.msra.mxu0 0
    %1160 = vmatprep.subr.bf16.mxu0 0
    %1161 = vmatpush2.bf16.xpose.msra.mxu0 0
    %1162 = vmatprep.subr.bf16.mxu0 0
    %1163 = vmatpush2.bf16.xpose.msra.mxu0 0
    %1164 = vmatprep.subr.bf16.mxu0 0
    %1165 = vmatpush2.bf16.xpose.msra.mxu0 0
    %1166 = vmatprep.subr.bf16.mxu0 0
    %1167 = vmatpush2.bf16.xpose.msra.mxu0 0
    %1168 = vmatprep.subr.bf16.mxu0 0
    %1169 = vmatpush2.bf16.xpose.msra.mxu0 0
    %1170 = vmatprep.subr.bf16.mxu0 0
    %1171 = vmatpush2.bf16.xpose.msra.mxu0 0
    %1172 = vmatprep.mubr.bf16.mxu0 0
    %1173 = vmatmul.mubr.bf16.gmra.mxu0 %v1135
    %v1174 = vpop.f32.mrf.mxu0
    %v1175 = vadd.f32 0.0, %v1174
    %v1176 = vpop.f32.mrf.mxu0
    %v1177 = vpop.f32.mrf.mxu0
    %v1178 = vpop.f32.mrf.mxu0
    %1179 = vdwg.mxu0
    %v1181 = vsel %vm1041, %v414, 0
    %v1184 = vsel %vm1041, %v732, 0
    %1186 = vmatprep.subr.bf16.mxu0 0
    %1187 = vmatpush1.bf16.xpose.msra.mxu0 0
    %1188 = vmatprep.subr.bf16.mxu0 0
    %1189 = vmatpush1.bf16.xpose.msra.mxu0 0
    %1190 = vmatprep.subr.bf16.mxu0 0
    %1191 = vmatpush1.bf16.xpose.msra.mxu0 0
    %1192 = vmatprep.subr.bf16.mxu0 0
    %1193 = vmatpush1.bf16.xpose.msra.mxu0 0
    %1194 = vmatprep.subr.bf16.mxu0 0
    %1195 = vmatpush1.bf16.xpose.msra.mxu0 0
    %1196 = vmatprep.subr.bf16.mxu0 0
    %1197 = vmatpush1.bf16.xpose.msra.mxu0 0
    %1198 = vmatprep.subr.bf16.mxu0 0
    %1199 = vmatpush1.bf16.xpose.msra.mxu0 0
    %1200 = vmatprep.subr.bf16.mxu0 0
    %1201 = vmatpush1.bf16.xpose.msra.mxu0 %v1184
    %1202 = vmatprep.subr.bf16.mxu0 0
    %1203 = vmatpush2.bf16.xpose.msra.mxu0 0
    %1204 = vmatprep.subr.bf16.mxu0 0
    %1205 = vmatpush2.bf16.xpose.msra.mxu0 0
    %1206 = vmatprep.subr.bf16.mxu0 0
    %1207 = vmatpush2.bf16.xpose.msra.mxu0 0
    %1208 = vmatprep.subr.bf16.mxu0 0
    %1209 = vmatpush2.bf16.xpose.msra.mxu0 0
    %1210 = vmatprep.subr.bf16.mxu0 0
    %1211 = vmatpush2.bf16.xpose.msra.mxu0 0
    %1212 = vmatprep.subr.bf16.mxu0 0
    %1213 = vmatpush2.bf16.xpose.msra.mxu0 0
    %1214 = vmatprep.subr.bf16.mxu0 0
    %1215 = vmatpush2.bf16.xpose.msra.mxu0 0
    %1216 = vmatprep.subr.bf16.mxu0 0
    %1217 = vmatpush2.bf16.xpose.msra.mxu0 0
    %1218 = vmatprep.mubr.bf16.mxu0 0
    %1219 = vmatmul.mubr.bf16.gmra.mxu0 %v1181
    %v1220 = vpop.f32.mrf.mxu0
    %v1221 = vadd.f32 0.0, %v1220
    %v1222 = vpop.f32.mrf.mxu0
    %v1223 = vpop.f32.mrf.mxu0
    %v1224 = vpop.f32.mrf.mxu0
    %1225 = vdwg.mxu0
    %v1227 = vsel %vm1041, %v415, 0
    %v1230 = vsel %vm1041, %v733, 0
    %1232 = vmatprep.subr.bf16.mxu0 0
    %1233 = vmatpush1.bf16.xpose.msra.mxu0 0
    %1234 = vmatprep.subr.bf16.mxu0 0
    %1235 = vmatpush1.bf16.xpose.msra.mxu0 0
    %1236 = vmatprep.subr.bf16.mxu0 0
    %1237 = vmatpush1.bf16.xpose.msra.mxu0 0
    %1238 = vmatprep.subr.bf16.mxu0 0
    %1239 = vmatpush1.bf16.xpose.msra.mxu0 0
    %1240 = vmatprep.subr.bf16.mxu0 0
    %1241 = vmatpush1.bf16.xpose.msra.mxu0 0
    %1242 = vmatprep.subr.bf16.mxu0 0
    %1243 = vmatpush1.bf16.xpose.msra.mxu0 0
    %1244 = vmatprep.subr.bf16.mxu0 0
    %1245 = vmatpush1.bf16.xpose.msra.mxu0 0
    %1246 = vmatprep.subr.bf16.mxu0 0
    %1247 = vmatpush1.bf16.xpose.msra.mxu0 %v1230
    %1248 = vmatprep.subr.bf16.mxu0 0
    %1249 = vmatpush2.bf16.xpose.msra.mxu0 0
    %1250 = vmatprep.subr.bf16.mxu0 0
    %1251 = vmatpush2.bf16.xpose.msra.mxu0 0
    %1252 = vmatprep.subr.bf16.mxu0 0
    %1253 = vmatpush2.bf16.xpose.msra.mxu0 0
    %1254 = vmatprep.subr.bf16.mxu0 0
    %1255 = vmatpush2.bf16.xpose.msra.mxu0 0
    %1256 = vmatprep.subr.bf16.mxu0 0
    %1257 = vmatpush2.bf16.xpose.msra.mxu0 0
    %1258 = vmatprep.subr.bf16.mxu0 0
    %1259 = vmatpush2.bf16.xpose.msra.mxu0 0
    %1260 = vmatprep.subr.bf16.mxu0 0
    %1261 = vmatpush2.bf16.xpose.msra.mxu0 0
    %1262 = vmatprep.subr.bf16.mxu0 0
    %1263 = vmatpush2.bf16.xpose.msra.mxu0 0
    %1264 = vmatprep.mubr.bf16.mxu0 0
    %1265 = vmatmul.mubr.bf16.gmra.mxu0 %v1227
    %v1266 = vpop.f32.mrf.mxu0
    %v1267 = vadd.f32 0.0, %v1266
    %v1268 = vpop.f32.mrf.mxu0
    %v1269 = vpop.f32.mrf.mxu0
    %v1270 = vpop.f32.mrf.mxu0
    %1271 = vdwg.mxu0
    %v1273 = vsel %vm1041, %v416, 0
    %v1276 = vsel %vm1041, %v734, 0
    %1278 = vmatprep.subr.bf16.mxu0 0
    %1279 = vmatpush1.bf16.xpose.msra.mxu0 0
    %1280 = vmatprep.subr.bf16.mxu0 0
    %1281 = vmatpush1.bf16.xpose.msra.mxu0 0
    %1282 = vmatprep.subr.bf16.mxu0 0
    %1283 = vmatpush1.bf16.xpose.msra.mxu0 0
    %1284 = vmatprep.subr.bf16.mxu0 0
    %1285 = vmatpush1.bf16.xpose.msra.mxu0 0
    %1286 = vmatprep.subr.bf16.mxu0 0
    %1287 = vmatpush1.bf16.xpose.msra.mxu0 0
    %1288 = vmatprep.subr.bf16.mxu0 0
    %1289 = vmatpush1.bf16.xpose.msra.mxu0 0
    %1290 = vmatprep.subr.bf16.mxu0 0
    %1291 = vmatpush1.bf16.xpose.msra.mxu0 0
    %1292 = vmatprep.subr.bf16.mxu0 0
    %1293 = vmatpush1.bf16.xpose.msra.mxu0 %v1276
    %1294 = vmatprep.subr.bf16.mxu0 0
    %1295 = vmatpush2.bf16.xpose.msra.mxu0 0
    %1296 = vmatprep.subr.bf16.mxu0 0
    %1297 = vmatpush2.bf16.xpose.msra.mxu0 0
    %1298 = vmatprep.subr.bf16.mxu0 0
    %1299 = vmatpush2.bf16.xpose.msra.mxu0 0
    %1300 = vmatprep.subr.bf16.mxu0 0
    %1301 = vmatpush2.bf16.xpose.msra.mxu0 0
    %1302 = vmatprep.subr.bf16.mxu0 0
    %1303 = vmatpush2.bf16.xpose.msra.mxu0 0
    %1304 = vmatprep.subr.bf16.mxu0 0
    %1305 = vmatpush2.bf16.xpose.msra.mxu0 0
    %1306 = vmatprep.subr.bf16.mxu0 0
    %1307 = vmatpush2.bf16.xpose.msra.mxu0 0
    %1308 = vmatprep.subr.bf16.mxu0 0
    %1309 = vmatpush2.bf16.xpose.msra.mxu0 0
    %1310 = vmatprep.mubr.bf16.mxu0 0
    %1311 = vmatmul.mubr.bf16.gmra.mxu0 %v1273
    %v1312 = vpop.f32.mrf.mxu0
    %v1313 = vadd.f32 0.0, %v1312
    %v1314 = vpop.f32.mrf.mxu0
    %v1315 = vpop.f32.mrf.mxu0
    %v1316 = vpop.f32.mrf.mxu0
    %1317 = vdwg.mxu0
    %v1319 = vsel %vm1041, %v417, 0
    %v1322 = vsel %vm1041, %v735, 0
    %1324 = vmatprep.subr.bf16.mxu0 0
    %1325 = vmatpush1.bf16.xpose.msra.mxu0 0
    %1326 = vmatprep.subr.bf16.mxu0 0
    %1327 = vmatpush1.bf16.xpose.msra.mxu0 0
    %1328 = vmatprep.subr.bf16.mxu0 0
    %1329 = vmatpush1.bf16.xpose.msra.mxu0 0
    %1330 = vmatprep.subr.bf16.mxu0 0
    %1331 = vmatpush1.bf16.xpose.msra.mxu0 0
    %1332 = vmatprep.subr.bf16.mxu0 0
    %1333 = vmatpush1.bf16.xpose.msra.mxu0 0
    %1334 = vmatprep.subr.bf16.mxu0 0
    %1335 = vmatpush1.bf16.xpose.msra.mxu0 0
    %1336 = vmatprep.subr.bf16.mxu0 0
    %1337 = vmatpush1.bf16.xpose.msra.mxu0 0
    %1338 = vmatprep.subr.bf16.mxu0 0
    %1339 = vmatpush1.bf16.xpose.msra.mxu0 %v1322
    %1340 = vmatprep.subr.bf16.mxu0 0
    %1341 = vmatpush2.bf16.xpose.msra.mxu0 0
    %1342 = vmatprep.subr.bf16.mxu0 0
    %1343 = vmatpush2.bf16.xpose.msra.mxu0 0
    %1344 = vmatprep.subr.bf16.mxu0 0
    %1345 = vmatpush2.bf16.xpose.msra.mxu0 0
    %1346 = vmatprep.subr.bf16.mxu0 0
    %1347 = vmatpush2.bf16.xpose.msra.mxu0 0
    %1348 = vmatprep.subr.bf16.mxu0 0
    %1349 = vmatpush2.bf16.xpose.msra.mxu0 0
    %1350 = vmatprep.subr.bf16.mxu0 0
    %1351 = vmatpush2.bf16.xpose.msra.mxu0 0
    %1352 = vmatprep.subr.bf16.mxu0 0
    %1353 = vmatpush2.bf16.xpose.msra.mxu0 0
    %1354 = vmatprep.subr.bf16.mxu0 0
    %1355 = vmatpush2.bf16.xpose.msra.mxu0 0
    %1356 = vmatprep.mubr.bf16.mxu0 0
    %1357 = vmatmul.mubr.bf16.gmra.mxu0 %v1319
    %v1358 = vpop.f32.mrf.mxu0
    %v1359 = vadd.f32 0.0, %v1358
    %v1360 = vpop.f32.mrf.mxu0
    %v1361 = vpop.f32.mrf.mxu0
    %v1362 = vpop.f32.mrf.mxu0
    %1363 = vdwg.mxu0
    %v1365 = vsel %vm1041, %v418, 0
    %v1368 = vsel %vm1041, %v736, 0
    %1370 = vmatprep.subr.bf16.mxu0 0
    %1371 = vmatpush1.bf16.xpose.msra.mxu0 0
    %1372 = vmatprep.subr.bf16.mxu0 0
    %1373 = vmatpush1.bf16.xpose.msra.mxu0 0
    %1374 = vmatprep.subr.bf16.mxu0 0
    %1375 = vmatpush1.bf16.xpose.msra.mxu0 0
    %1376 = vmatprep.subr.bf16.mxu0 0
    %1377 = vmatpush1.bf16.xpose.msra.mxu0 0
    %1378 = vmatprep.subr.bf16.mxu0 0
    %1379 = vmatpush1.bf16.xpose.msra.mxu0 0
    %1380 = vmatprep.subr.bf16.mxu0 0
    %1381 = vmatpush1.bf16.xpose.msra.mxu0 0
    %1382 = vmatprep.subr.bf16.mxu0 0
    %1383 = vmatpush1.bf16.xpose.msra.mxu0 0
    %1384 = vmatprep.subr.bf16.mxu0 0
    %1385 = vmatpush1.bf16.xpose.msra.mxu0 %v1368
    %1386 = vmatprep.subr.bf16.mxu0 0
    %1387 = vmatpush2.bf16.xpose.msra.mxu0 0
    %1388 = vmatprep.subr.bf16.mxu0 0
    %1389 = vmatpush2.bf16.xpose.msra.mxu0 0
    %1390 = vmatprep.subr.bf16.mxu0 0
    %1391 = vmatpush2.bf16.xpose.msra.mxu0 0
    %1392 = vmatprep.subr.bf16.mxu0 0
    %1393 = vmatpush2.bf16.xpose.msra.mxu0 0
    %1394 = vmatprep.subr.bf16.mxu0 0
    %1395 = vmatpush2.bf16.xpose.msra.mxu0 0
    %1396 = vmatprep.subr.bf16.mxu0 0
    %1397 = vmatpush2.bf16.xpose.msra.mxu0 0
    %1398 = vmatprep.subr.bf16.mxu0 0
    %1399 = vmatpush2.bf16.xpose.msra.mxu0 0
    %1400 = vmatprep.subr.bf16.mxu0 0
    %1401 = vmatpush2.bf16.xpose.msra.mxu0 0
    %1402 = vmatprep.mubr.bf16.mxu0 0
    %1403 = vmatmul.mubr.bf16.gmra.mxu0 %v1365
    %v1404 = vpop.f32.mrf.mxu0
    %v1405 = vadd.f32 0.0, %v1404
    %v1406 = vpop.f32.mrf.mxu0
    %v1407 = vpop.f32.mrf.mxu0
    %v1408 = vpop.f32.mrf.mxu0
    %1409 = vdwg.mxu0
    %v1410 = vsel %vm1041, %v1083, -inf
    %1411 = vmax.xlane.f32.xlu0 %v1410
    %v1412 = vpop.xlane.xlu0 %1411
    %v1413 = vsel %vm1041, %v1129, -inf
    %1414 = vmax.xlane.f32.xlu0 %v1413
    %v1415 = vpop.xlane.xlu0 %1414
    %v1416 = vsel %vm1041, %v1175, -inf
    %1417 = vmax.xlane.f32.xlu0 %v1416
    %v1418 = vpop.xlane.xlu0 %1417
    %v1419 = vsel %vm1041, %v1221, -inf
    %1420 = vmax.xlane.f32.xlu0 %v1419
    %v1421 = vpop.xlane.xlu0 %1420
    %v1422 = vsel %vm1041, %v1267, -inf
    %1423 = vmax.xlane.f32.xlu0 %v1422
    %v1424 = vpop.xlane.xlu0 %1423
    %v1425 = vsel %vm1041, %v1313, -inf
    %1426 = vmax.xlane.f32.xlu0 %v1425
    %v1427 = vpop.xlane.xlu0 %1426
    %v1428 = vsel %vm1041, %v1359, -inf
    %1429 = vmax.xlane.f32.xlu0 %v1428
    %v1430 = vpop.xlane.xlu0 %1429
    %v1431 = vsel %vm1041, %v1405, -inf
    %1432 = vmax.xlane.f32.xlu0 %v1431
    %v1433 = vpop.xlane.xlu0 %1432
    %v1434 = vsub.f32 %v1083, %v1412
    %v1435 = vsub.f32 %v1129, %v1415
    %v1436 = vsub.f32 %v1175, %v1418
    %v1437 = vsub.f32 %v1221, %v1421
    %v1438 = vsub.f32 %v1267, %v1424
    %v1439 = vsub.f32 %v1313, %v1427
    %v1440 = vsub.f32 %v1359, %v1430
    %v1441 = vsub.f32 %v1405, %v1433
    %v1442 = vmul.f32 %v1434, 1.442695
    %v1443 = vpow.pop %v1442
    %v1444 = vmul.f32 %v1435, 1.442695
    %v1445 = vpow.pop %v1444
    %v1446 = vmul.f32 %v1436, 1.442695
    %v1447 = vpow.pop %v1446
    %v1448 = vmul.f32 %v1437, 1.442695
    %v1449 = vpow.pop %v1448
    %v1450 = vmul.f32 %v1438, 1.442695
    %v1451 = vpow.pop %v1450
    %v1452 = vmul.f32 %v1439, 1.442695
    %v1453 = vpow.pop %v1452
    %v1454 = vmul.f32 %v1440, 1.442695
    %v1455 = vpow.pop %v1454
    %v1456 = vmul.f32 %v1441, 1.442695
    %v1457 = vpow.pop %v1456
    %v1458 = vsel %vm1041, %v1443, 0.0
    %1459 = vadd.xlane.f32.xlu0 %v1458
    %v1460 = vpop.xlane.xlu0 %1459
    %v1461 = vsel %vm1041, %v1445, 0.0
    %1462 = vadd.xlane.f32.xlu0 %v1461
    %v1463 = vpop.xlane.xlu0 %1462
    %v1464 = vsel %vm1041, %v1447, 0.0
    %1465 = vadd.xlane.f32.xlu0 %v1464
    %v1466 = vpop.xlane.xlu0 %1465
    %v1467 = vsel %vm1041, %v1449, 0.0
    %1468 = vadd.xlane.f32.xlu0 %v1467
    %v1469 = vpop.xlane.xlu0 %1468
    %v1470 = vsel %vm1041, %v1451, 0.0
    %1471 = vadd.xlane.f32.xlu0 %v1470
    %v1472 = vpop.xlane.xlu0 %1471
    %v1473 = vsel %vm1041, %v1453, 0.0
    %1474 = vadd.xlane.f32.xlu0 %v1473
    %v1475 = vpop.xlane.xlu0 %1474
    %v1476 = vsel %vm1041, %v1455, 0.0
    %1477 = vadd.xlane.f32.xlu0 %v1476
    %v1478 = vpop.xlane.xlu0 %1477
    %v1479 = vsel %vm1041, %v1457, 0.0
    %1480 = vadd.xlane.f32.xlu0 %v1479
    %v1481 = vpop.xlane.xlu0 %1480
    %v1482 = vrcp.pop %v1460
    %v1483 = vrcp.pop %v1463
    %v1484 = vrcp.pop %v1466
    %v1485 = vrcp.pop %v1469
    %v1486 = vrcp.pop %v1472
    %v1487 = vrcp.pop %v1475
    %v1488 = vrcp.pop %v1478
    %v1489 = vrcp.pop %v1481
    %v1490 = vmul.f32 %v1443, %v1482
    %v1491 = vmul.f32 %v1445, %v1483
    %v1492 = vmul.f32 %v1447, %v1484
    %v1493 = vmul.f32 %v1449, %v1485
    %v1494 = vmul.f32 %v1451, %v1486
    %v1495 = vmul.f32 %v1453, %v1487
    %v1496 = vmul.f32 %v1455, %v1488
    %v1497 = vmul.f32 %v1457, %v1489
    %v1498 = vpack.c.bf16 %v1490, %v1490
    %v1499 = vpack.c.bf16 %v1491, %v1491
    %v1500 = vpack.c.bf16 %v1492, %v1492
    %v1501 = vpack.c.bf16 %v1493, %v1493
    %v1502 = vpack.c.bf16 %v1494, %v1494
    %v1503 = vpack.c.bf16 %v1495, %v1495
    %v1504 = vpack.c.bf16 %v1496, %v1496
    %v1505 = vpack.c.bf16 %v1497, %v1497
    %v1507 = vsel %vm1041, %v1498, 0
    %vm1509 = vcmask 1043456
    %v1511 = vsel %vm1509, %v1033, 0
    %1513 = vmatprep.subr.bf16.mxu0 0
    %1514 = vmatpush1.bf16.msra.mxu0 0
    %1515 = vmatprep.subr.bf16.mxu0 0
    %1516 = vmatpush1.bf16.msra.mxu0 0
    %1517 = vmatprep.subr.bf16.mxu0 0
    %1518 = vmatpush1.bf16.msra.mxu0 0
    %1519 = vmatprep.subr.bf16.mxu0 0
    %1520 = vmatpush1.bf16.msra.mxu0 0
    %1521 = vmatprep.subr.bf16.mxu0 0
    %1522 = vmatpush1.bf16.msra.mxu0 0
    %1523 = vmatprep.subr.bf16.mxu0 0
    %1524 = vmatpush1.bf16.msra.mxu0 0
    %1525 = vmatprep.subr.bf16.mxu0 0
    %1526 = vmatpush1.bf16.msra.mxu0 0
    %1527 = vmatprep.subr.bf16.mxu0 0
    %1528 = vmatpush1.bf16.msra.mxu0 %v1511
    %1529 = vmatprep.subr.bf16.mxu0 0
    %1530 = vmatpush2.bf16.msra.mxu0 0
    %1531 = vmatprep.subr.bf16.mxu0 0
    %1532 = vmatpush2.bf16.msra.mxu0 0
    %1533 = vmatprep.subr.bf16.mxu0 0
    %1534 = vmatpush2.bf16.msra.mxu0 0
    %1535 = vmatprep.subr.bf16.mxu0 0
    %1536 = vmatpush2.bf16.msra.mxu0 0
    %1537 = vmatprep.subr.bf16.mxu0 0
    %1538 = vmatpush2.bf16.msra.mxu0 0
    %1539 = vmatprep.subr.bf16.mxu0 0
    %1540 = vmatpush2.bf16.msra.mxu0 0
    %1541 = vmatprep.subr.bf16.mxu0 0
    %1542 = vmatpush2.bf16.msra.mxu0 0
    %1543 = vmatprep.subr.bf16.mxu0 0
    %1544 = vmatpush2.bf16.msra.mxu0 0
    %1545 = vmatprep.mubr.bf16.mxu0 0
    %1546 = vmatmul.mubr.bf16.gmra.mxu0 %v1507
    %v1547 = vpop.f32.mrf.mxu0
    %v1548 = vadd.f32 0.0, %v1547
    %v1549 = vpop.f32.mrf.mxu0
    %v1550 = vpop.f32.mrf.mxu0
    %v1551 = vpop.f32.mrf.mxu0
    %1552 = vdwg.mxu0
    %v1554 = vsel %vm1041, %v1499, 0
    %v1557 = vsel %vm1509, %v1034, 0
    %1559 = vmatprep.subr.bf16.mxu0 0
    %1560 = vmatpush1.bf16.msra.mxu0 0
    %1561 = vmatprep.subr.bf16.mxu0 0
    %1562 = vmatpush1.bf16.msra.mxu0 0
    %1563 = vmatprep.subr.bf16.mxu0 0
    %1564 = vmatpush1.bf16.msra.mxu0 0
    %1565 = vmatprep.subr.bf16.mxu0 0
    %1566 = vmatpush1.bf16.msra.mxu0 0
    %1567 = vmatprep.subr.bf16.mxu0 0
    %1568 = vmatpush1.bf16.msra.mxu0 0
    %1569 = vmatprep.subr.bf16.mxu0 0
    %1570 = vmatpush1.bf16.msra.mxu0 0
    %1571 = vmatprep.subr.bf16.mxu0 0
    %1572 = vmatpush1.bf16.msra.mxu0 0
    %1573 = vmatprep.subr.bf16.mxu0 0
    %1574 = vmatpush1.bf16.msra.mxu0 %v1557
    %1575 = vmatprep.subr.bf16.mxu0 0
    %1576 = vmatpush2.bf16.msra.mxu0 0
    %1577 = vmatprep.subr.bf16.mxu0 0
    %1578 = vmatpush2.bf16.msra.mxu0 0
    %1579 = vmatprep.subr.bf16.mxu0 0
    %1580 = vmatpush2.bf16.msra.mxu0 0
    %1581 = vmatprep.subr.bf16.mxu0 0
    %1582 = vmatpush2.bf16.msra.mxu0 0
    %1583 = vmatprep.subr.bf16.mxu0 0
    %1584 = vmatpush2.bf16.msra.mxu0 0
    %1585 = vmatprep.subr.bf16.mxu0 0
    %1586 = vmatpush2.bf16.msra.mxu0 0
    %1587 = vmatprep.subr.bf16.mxu0 0
    %1588 = vmatpush2.bf16.msra.mxu0 0
    %1589 = vmatprep.subr.bf16.mxu0 0
    %1590 = vmatpush2.bf16.msra.mxu0 0
    %1591 = vmatprep.mubr.bf16.mxu0 0
    %1592 = vmatmul.mubr.bf16.gmra.mxu0 %v1554
    %v1593 = vpop.f32.mrf.mxu0
    %v1594 = vadd.f32 0.0, %v1593
    %v1595 = vpop.f32.mrf.mxu0
    %v1596 = vpop.f32.mrf.mxu0
    %v1597 = vpop.f32.mrf.mxu0
    %1598 = vdwg.mxu0
    %v1600 = vsel %vm1041, %v1500, 0
    %v1603 = vsel %vm1509, %v1035, 0
    %1605 = vmatprep.subr.bf16.mxu0 0
    %1606 = vmatpush1.bf16.msra.mxu0 0
    %1607 = vmatprep.subr.bf16.mxu0 0
    %1608 = vmatpush1.bf16.msra.mxu0 0
    %1609 = vmatprep.subr.bf16.mxu0 0
    %1610 = vmatpush1.bf16.msra.mxu0 0
    %1611 = vmatprep.subr.bf16.mxu0 0
    %1612 = vmatpush1.bf16.msra.mxu0 0
    %1613 = vmatprep.subr.bf16.mxu0 0
    %1614 = vmatpush1.bf16.msra.mxu0 0
    %1615 = vmatprep.subr.bf16.mxu0 0
    %1616 = vmatpush1.bf16.msra.mxu0 0
    %1617 = vmatprep.subr.bf16.mxu0 0
    %1618 = vmatpush1.bf16.msra.mxu0 0
    %1619 = vmatprep.subr.bf16.mxu0 0
    %1620 = vmatpush1.bf16.msra.mxu0 %v1603
    %1621 = vmatprep.subr.bf16.mxu0 0
    %1622 = vmatpush2.bf16.msra.mxu0 0
    %1623 = vmatprep.subr.bf16.mxu0 0
    %1624 = vmatpush2.bf16.msra.mxu0 0
    %1625 = vmatprep.subr.bf16.mxu0 0
    %1626 = vmatpush2.bf16.msra.mxu0 0
    %1627 = vmatprep.subr.bf16.mxu0 0
    %1628 = vmatpush2.bf16.msra.mxu0 0
    %1629 = vmatprep.subr.bf16.mxu0 0
    %1630 = vmatpush2.bf16.msra.mxu0 0
    %1631 = vmatprep.subr.bf16.mxu0 0
    %1632 = vmatpush2.bf16.msra.mxu0 0
    %1633 = vmatprep.subr.bf16.mxu0 0
    %1634 = vmatpush2.bf16.msra.mxu0 0
    %1635 = vmatprep.subr.bf16.mxu0 0
    %1636 = vmatpush2.bf16.msra.mxu0 0
    %1637 = vmatprep.mubr.bf16.mxu0 0
    %1638 = vmatmul.mubr.bf16.gmra.mxu0 %v1600
    %v1639 = vpop.f32.mrf.mxu0
    %v1640 = vadd.f32 0.0, %v1639
    %v1641 = vpop.f32.mrf.mxu0
    %v1642 = vpop.f32.mrf.mxu0
    %v1643 = vpop.f32.mrf.mxu0
    %1644 = vdwg.mxu0
    %v1646 = vsel %vm1041, %v1501, 0
    %v1649 = vsel %vm1509, %v1036, 0
    %1651 = vmatprep.subr.bf16.mxu0 0
    %1652 = vmatpush1.bf16.msra.mxu0 0
    %1653 = vmatprep.subr.bf16.mxu0 0
    %1654 = vmatpush1.bf16.msra.mxu0 0
    %1655 = vmatprep.subr.bf16.mxu0 0
    %1656 = vmatpush1.bf16.msra.mxu0 0
    %1657 = vmatprep.subr.bf16.mxu0 0
    %1658 = vmatpush1.bf16.msra.mxu0 0
    %1659 = vmatprep.subr.bf16.mxu0 0
    %1660 = vmatpush1.bf16.msra.mxu0 0
    %1661 = vmatprep.subr.bf16.mxu0 0
    %1662 = vmatpush1.bf16.msra.mxu0 0
    %1663 = vmatprep.subr.bf16.mxu0 0
    %1664 = vmatpush1.bf16.msra.mxu0 0
    %1665 = vmatprep.subr.bf16.mxu0 0
    %1666 = vmatpush1.bf16.msra.mxu0 %v1649
    %1667 = vmatprep.subr.bf16.mxu0 0
    %1668 = vmatpush2.bf16.msra.mxu0 0
    %1669 = vmatprep.subr.bf16.mxu0 0
    %1670 = vmatpush2.bf16.msra.mxu0 0
    %1671 = vmatprep.subr.bf16.mxu0 0
    %1672 = vmatpush2.bf16.msra.mxu0 0
    %1673 = vmatprep.subr.bf16.mxu0 0
    %1674 = vmatpush2.bf16.msra.mxu0 0
    %1675 = vmatprep.subr.bf16.mxu0 0
    %1676 = vmatpush2.bf16.msra.mxu0 0
    %1677 = vmatprep.subr.bf16.mxu0 0
    %1678 = vmatpush2.bf16.msra.mxu0 0
    %1679 = vmatprep.subr.bf16.mxu0 0
    %1680 = vmatpush2.bf16.msra.mxu0 0
    %1681 = vmatprep.subr.bf16.mxu0 0
    %1682 = vmatpush2.bf16.msra.mxu0 0
    %1683 = vmatprep.mubr.bf16.mxu0 0
    %1684 = vmatmul.mubr.bf16.gmra.mxu0 %v1646
    %v1685 = vpop.f32.mrf.mxu0
    %v1686 = vadd.f32 0.0, %v1685
    %v1687 = vpop.f32.mrf.mxu0
    %v1688 = vpop.f32.mrf.mxu0
    %v1689 = vpop.f32.mrf.mxu0
    %1690 = vdwg.mxu0
    %v1692 = vsel %vm1041, %v1502, 0
    %v1695 = vsel %vm1509, %v1037, 0
    %1697 = vmatprep.subr.bf16.mxu0 0
    %1698 = vmatpush1.bf16.msra.mxu0 0
    %1699 = vmatprep.subr.bf16.mxu0 0
    %1700 = vmatpush1.bf16.msra.mxu0 0
    %1701 = vmatprep.subr.bf16.mxu0 0
    %1702 = vmatpush1.bf16.msra.mxu0 0
    %1703 = vmatprep.subr.bf16.mxu0 0
    %1704 = vmatpush1.bf16.msra.mxu0 0
    %1705 = vmatprep.subr.bf16.mxu0 0
    %1706 = vmatpush1.bf16.msra.mxu0 0
    %1707 = vmatprep.subr.bf16.mxu0 0
    %1708 = vmatpush1.bf16.msra.mxu0 0
    %1709 = vmatprep.subr.bf16.mxu0 0
    %1710 = vmatpush1.bf16.msra.mxu0 0
    %1711 = vmatprep.subr.bf16.mxu0 0
    %1712 = vmatpush1.bf16.msra.mxu0 %v1695
    %1713 = vmatprep.subr.bf16.mxu0 0
    %1714 = vmatpush2.bf16.msra.mxu0 0
    %1715 = vmatprep.subr.bf16.mxu0 0
    %1716 = vmatpush2.bf16.msra.mxu0 0
    %1717 = vmatprep.subr.bf16.mxu0 0
    %1718 = vmatpush2.bf16.msra.mxu0 0
    %1719 = vmatprep.subr.bf16.mxu0 0
    %1720 = vmatpush2.bf16.msra.mxu0 0
    %1721 = vmatprep.subr.bf16.mxu0 0
    %1722 = vmatpush2.bf16.msra.mxu0 0
    %1723 = vmatprep.subr.bf16.mxu0 0
    %1724 = vmatpush2.bf16.msra.mxu0 0
    %1725 = vmatprep.subr.bf16.mxu0 0
    %1726 = vmatpush2.bf16.msra.mxu0 0
    %1727 = vmatprep.subr.bf16.mxu0 0
    %1728 = vmatpush2.bf16.msra.mxu0 0
    %1729 = vmatprep.mubr.bf16.mxu0 0
    %1730 = vmatmul.mubr.bf16.gmra.mxu0 %v1692
    %v1731 = vpop.f32.mrf.mxu0
    %v1732 = vadd.f32 0.0, %v1731
    %v1733 = vpop.f32.mrf.mxu0
    %v1734 = vpop.f32.mrf.mxu0
    %v1735 = vpop.f32.mrf.mxu0
    %1736 = vdwg.mxu0
    %v1738 = vsel %vm1041, %v1503, 0
    %v1741 = vsel %vm1509, %v1038, 0
    %1743 = vmatprep.subr.bf16.mxu0 0
    %1744 = vmatpush1.bf16.msra.mxu0 0
    %1745 = vmatprep.subr.bf16.mxu0 0
    %1746 = vmatpush1.bf16.msra.mxu0 0
    %1747 = vmatprep.subr.bf16.mxu0 0
    %1748 = vmatpush1.bf16.msra.mxu0 0
    %1749 = vmatprep.subr.bf16.mxu0 0
    %1750 = vmatpush1.bf16.msra.mxu0 0
    %1751 = vmatprep.subr.bf16.mxu0 0
    %1752 = vmatpush1.bf16.msra.mxu0 0
    %1753 = vmatprep.subr.bf16.mxu0 0
    %1754 = vmatpush1.bf16.msra.mxu0 0
    %1755 = vmatprep.subr.bf16.mxu0 0
    %1756 = vmatpush1.bf16.msra.mxu0 0
    %1757 = vmatprep.subr.bf16.mxu0 0
    %1758 = vmatpush1.bf16.msra.mxu0 %v1741
    %1759 = vmatprep.subr.bf16.mxu0 0
    %1760 = vmatpush2.bf16.msra.mxu0 0
    %1761 = vmatprep.subr.bf16.mxu0 0
    %1762 = vmatpush2.bf16.msra.mxu0 0
    %1763 = vmatprep.subr.bf16.mxu0 0
    %1764 = vmatpush2.bf16.msra.mxu0 0
    %1765 = vmatprep.subr.bf16.mxu0 0
    %1766 = vmatpush2.bf16.msra.mxu0 0
    %1767 = vmatprep.subr.bf16.mxu0 0
    %1768 = vmatpush2.bf16.msra.mxu0 0
    %1769 = vmatprep.subr.bf16.mxu0 0
    %1770 = vmatpush2.bf16.msra.mxu0 0
    %1771 = vmatprep.subr.bf16.mxu0 0
    %1772 = vmatpush2.bf16.msra.mxu0 0
    %1773 = vmatprep.subr.bf16.mxu0 0
    %1774 = vmatpush2.bf16.msra.mxu0 0
    %1775 = vmatprep.mubr.bf16.mxu0 0
    %1776 = vmatmul.mubr.bf16.gmra.mxu0 %v1738
    %v1777 = vpop.f32.mrf.mxu0
    %v1778 = vadd.f32 0.0, %v1777
    %v1779 = vpop.f32.mrf.mxu0
    %v1780 = vpop.f32.mrf.mxu0
    %v1781 = vpop.f32.mrf.mxu0
    %1782 = vdwg.mxu0
    %v1784 = vsel %vm1041, %v1504, 0
    %v1787 = vsel %vm1509, %v1039, 0
    %1789 = vmatprep.subr.bf16.mxu0 0
    %1790 = vmatpush1.bf16.msra.mxu0 0
    %1791 = vmatprep.subr.bf16.mxu0 0
    %1792 = vmatpush1.bf16.msra.mxu0 0
    %1793 = vmatprep.subr.bf16.mxu0 0
    %1794 = vmatpush1.bf16.msra.mxu0 0
    %1795 = vmatprep.subr.bf16.mxu0 0
    %1796 = vmatpush1.bf16.msra.mxu0 0
    %1797 = vmatprep.subr.bf16.mxu0 0
    %1798 = vmatpush1.bf16.msra.mxu0 0
    %1799 = vmatprep.subr.bf16.mxu0 0
    %1800 = vmatpush1.bf16.msra.mxu0 0
    %1801 = vmatprep.subr.bf16.mxu0 0
    %1802 = vmatpush1.bf16.msra.mxu0 0
    %1803 = vmatprep.subr.bf16.mxu0 0
    %1804 = vmatpush1.bf16.msra.mxu0 %v1787
    %1805 = vmatprep.subr.bf16.mxu0 0
    %1806 = vmatpush2.bf16.msra.mxu0 0
    %1807 = vmatprep.subr.bf16.mxu0 0
    %1808 = vmatpush2.bf16.msra.mxu0 0
    %1809 = vmatprep.subr.bf16.mxu0 0
    %1810 = vmatpush2.bf16.msra.mxu0 0
    %1811 = vmatprep.subr.bf16.mxu0 0
    %1812 = vmatpush2.bf16.msra.mxu0 0
    %1813 = vmatprep.subr.bf16.mxu0 0
    %1814 = vmatpush2.bf16.msra.mxu0 0
    %1815 = vmatprep.subr.bf16.mxu0 0
    %1816 = vmatpush2.bf16.msra.mxu0 0
    %1817 = vmatprep.subr.bf16.mxu0 0
    %1818 = vmatpush2.bf16.msra.mxu0 0
    %1819 = vmatprep.subr.bf16.mxu0 0
    %1820 = vmatpush2.bf16.msra.mxu0 0
    %1821 = vmatprep.mubr.bf16.mxu0 0
    %1822 = vmatmul.mubr.bf16.gmra.mxu0 %v1784
    %v1823 = vpop.f32.mrf.mxu0
    %v1824 = vadd.f32 0.0, %v1823
    %v1825 = vpop.f32.mrf.mxu0
    %v1826 = vpop.f32.mrf.mxu0
    %v1827 = vpop.f32.mrf.mxu0
    %1828 = vdwg.mxu0
    %v1830 = vsel %vm1041, %v1505, 0
    %v1833 = vsel %vm1509, %v1040, 0
    %1835 = vmatprep.subr.bf16.mxu0 0
    %1836 = vmatpush1.bf16.msra.mxu0 0
    %1837 = vmatprep.subr.bf16.mxu0 0
    %1838 = vmatpush1.bf16.msra.mxu0 0
    %1839 = vmatprep.subr.bf16.mxu0 0
    %1840 = vmatpush1.bf16.msra.mxu0 0
    %1841 = vmatprep.subr.bf16.mxu0 0
    %1842 = vmatpush1.bf16.msra.mxu0 0
    %1843 = vmatprep.subr.bf16.mxu0 0
    %1844 = vmatpush1.bf16.msra.mxu0 0
    %1845 = vmatprep.subr.bf16.mxu0 0
    %1846 = vmatpush1.bf16.msra.mxu0 0
    %1847 = vmatprep.subr.bf16.mxu0 0
    %1848 = vmatpush1.bf16.msra.mxu0 0
    %1849 = vmatprep.subr.bf16.mxu0 0
    %1850 = vmatpush1.bf16.msra.mxu0 %v1833
    %1851 = vmatprep.subr.bf16.mxu0 0
    %1852 = vmatpush2.bf16.msra.mxu0 0
    %1853 = vmatprep.subr.bf16.mxu0 0
    %1854 = vmatpush2.bf16.msra.mxu0 0
    %1855 = vmatprep.subr.bf16.mxu0 0
    %1856 = vmatpush2.bf16.msra.mxu0 0
    %1857 = vmatprep.subr.bf16.mxu0 0
    %1858 = vmatpush2.bf16.msra.mxu0 0
    %1859 = vmatprep.subr.bf16.mxu0 0
    %1860 = vmatpush2.bf16.msra.mxu0 0
    %1861 = vmatprep.subr.bf16.mxu0 0
    %1862 = vmatpush2.bf16.msra.mxu0 0
    %1863 = vmatprep.subr.bf16.mxu0 0
    %1864 = vmatpush2.bf16.msra.mxu0 0
    %1865 = vmatprep.subr.bf16.mxu0 0
    %1866 = vmatpush2.bf16.msra.mxu0 0
    %1867 = vmatprep.mubr.bf16.mxu0 0
    %1868 = vmatmul.mubr.bf16.gmra.mxu0 %v1830
    %v1869 = vpop.f32.mrf.mxu0
    %v1870 = vadd.f32 0.0, %v1869
    %v1871 = vpop.f32.mrf.mxu0
    %v1872 = vpop.f32.mrf.mxu0
    %v1873 = vpop.f32.mrf.mxu0
    %1874 = vdwg.mxu0
    %v1875 = vcombine.low %v1548, %v1640
    %v1876 = vcombine.high %v1548, %v1640
    %v1878 = vunpack.c.l.s4 1983009808
    %v1879 = vunpack.c.0.s8 %v1878
    %v1880 = vlaneseq
    %v1881 = vshrl.u32 %v1880, 7
    %v1882 = vsub.s32 %v1879, %v1881
    %v1883 = vrot.slane %v1875, %v1882
    %v1885 = vunpack.c.l.s4 1983009808
    %v1886 = vunpack.c.0.s8 %v1885
    %v1887 = vlaneseq
    %v1888 = vshrl.u32 %v1887, 7
    %v1889 = vsub.s32 %v1886, %v1888
    %v1890 = vrot.slane %v1876, %v1889
    %v1891 = vcombine.low %v1594, %v1686
    %v1892 = vcombine.high %v1594, %v1686
    %v1894 = vunpack.c.l.s4 1983009808
    %v1895 = vunpack.c.0.s8 %v1894
    %v1896 = vlaneseq
    %v1897 = vshrl.u32 %v1896, 7
    %v1898 = vsub.s32 %v1895, %v1897
    %v1899 = vrot.slane %v1891, %v1898
    %v1901 = vunpack.c.l.s4 1983009808
    %v1902 = vunpack.c.0.s8 %v1901
    %v1903 = vlaneseq
    %v1904 = vshrl.u32 %v1903, 7
    %v1905 = vsub.s32 %v1902, %v1904
    %v1906 = vrot.slane %v1892, %v1905
    %v1907 = vcombine.low %v1883, %v1899
    %v1908 = vcombine.high %v1883, %v1899
    %v1910 = vunpack.c.l.s4 1934713408
    %v1911 = vunpack.c.0.s8 %v1910
    %v1912 = vlaneseq
    %v1913 = vshrl.u32 %v1912, 7
    %v1914 = vsub.s32 %v1911, %v1913
    %v1915 = vrot.slane %v1907, %v1914
    %v1917 = vunpack.c.l.s4 1934713408
    %v1918 = vunpack.c.0.s8 %v1917
    %v1919 = vlaneseq
    %v1920 = vshrl.u32 %v1919, 7
    %v1921 = vsub.s32 %v1918, %v1920
    %v1922 = vrot.slane %v1908, %v1921
    %v1923 = vcombine.low %v1890, %v1906
    %v1924 = vcombine.high %v1890, %v1906
    %v1926 = vunpack.c.l.s4 1934713408
    %v1927 = vunpack.c.0.s8 %v1926
    %v1928 = vlaneseq
    %v1929 = vshrl.u32 %v1928, 7
    %v1930 = vsub.s32 %v1927, %v1929
    %v1931 = vrot.slane %v1923, %v1930
    %v1933 = vunpack.c.l.s4 1934713408
    %v1934 = vunpack.c.0.s8 %v1933
    %v1935 = vlaneseq
    %v1936 = vshrl.u32 %v1935, 7
    %v1937 = vsub.s32 %v1934, %v1936
    %v1938 = vrot.slane %v1924, %v1937
    %v1939 = vcombine.high %v1915, 0.0
    %v1940 = vcombine.high %v1922, 0.0
    %v1941 = vcombine.high %v1931, 0.0
    %v1942 = vcombine.high %v1938, 0.0
    %v1943 = vcombine.low %v1732, %v1824
    %v1944 = vcombine.high %v1732, %v1824
    %v1946 = vunpack.c.l.s4 1983009808
    %v1947 = vunpack.c.0.s8 %v1946
    %v1948 = vlaneseq
    %v1949 = vshrl.u32 %v1948, 7
    %v1950 = vsub.s32 %v1947, %v1949
    %v1951 = vrot.slane %v1943, %v1950
    %v1953 = vunpack.c.l.s4 1983009808
    %v1954 = vunpack.c.0.s8 %v1953
    %v1955 = vlaneseq
    %v1956 = vshrl.u32 %v1955, 7
    %v1957 = vsub.s32 %v1954, %v1956
    %v1958 = vrot.slane %v1944, %v1957
    %v1959 = vcombine.low %v1778, %v1870
    %v1960 = vcombine.high %v1778, %v1870
    %v1962 = vunpack.c.l.s4 1983009808
    %v1963 = vunpack.c.0.s8 %v1962
    %v1964 = vlaneseq
    %v1965 = vshrl.u32 %v1964, 7
    %v1966 = vsub.s32 %v1963, %v1965
    %v1967 = vrot.slane %v1959, %v1966
    %v1969 = vunpack.c.l.s4 1983009808
    %v1970 = vunpack.c.0.s8 %v1969
    %v1971 = vlaneseq
    %v1972 = vshrl.u32 %v1971, 7
    %v1973 = vsub.s32 %v1970, %v1972
    %v1974 = vrot.slane %v1960, %v1973
    %v1975 = vcombine.low %v1951, %v1967
    %v1976 = vcombine.high %v1951, %v1967
    %v1978 = vunpack.c.l.s4 1934713408
    %v1979 = vunpack.c.0.s8 %v1978
    %v1980 = vlaneseq
    %v1981 = vshrl.u32 %v1980, 7
    %v1982 = vsub.s32 %v1979, %v1981
    %v1983 = vrot.slane %v1975, %v1982
    %v1985 = vunpack.c.l.s4 1934713408
    %v1986 = vunpack.c.0.s8 %v1985
    %v1987 = vlaneseq
    %v1988 = vshrl.u32 %v1987, 7
    %v1989 = vsub.s32 %v1986, %v1988
    %v1990 = vrot.slane %v1976, %v1989
    %v1991 = vcombine.low %v1958, %v1974
    %v1992 = vcombine.high %v1958, %v1974
    %v1994 = vunpack.c.l.s4 1934713408
    %v1995 = vunpack.c.0.s8 %v1994
    %v1996 = vlaneseq
    %v1997 = vshrl.u32 %v1996, 7
    %v1998 = vsub.s32 %v1995, %v1997
    %v1999 = vrot.slane %v1991, %v1998
    %v2001 = vunpack.c.l.s4 1934713408
    %v2002 = vunpack.c.0.s8 %v2001
    %v2003 = vlaneseq
    %v2004 = vshrl.u32 %v2003, 7
    %v2005 = vsub.s32 %v2002, %v2004
    %v2006 = vrot.slane %v1992, %v2005
    %v2007 = vcombine.high %v1983, 0.0
    %v2008 = vcombine.high %v1990, 0.0
    %v2009 = vcombine.high %v1999, 0.0
    %v2010 = vcombine.high %v2006, 0.0
    %v2011 = vcombine.low %v1915, %v1922
    %v2013 = vunpack.c.l.s4 1983009808
    %v2014 = vunpack.c.0.s8 %v2013
    %v2015 = vlaneseq
    %v2016 = vshrl.u32 %v2015, 7
    %v2017 = vsub.s32 %v2014, %v2016
    %v2018 = vrot.slane %v2011, %v2017
    %v2019 = vcombine.low %v1939, %v1940
    %v2021 = vunpack.c.l.s4 1983009808
    %v2022 = vunpack.c.0.s8 %v2021
    %v2023 = vlaneseq
    %v2024 = vshrl.u32 %v2023, 7
    %v2025 = vsub.s32 %v2022, %v2024
    %v2026 = vrot.slane %v2019, %v2025
    %v2027 = vcombine.low %v1931, %v1938
    %v2029 = vunpack.c.l.s4 1983009808
    %v2030 = vunpack.c.0.s8 %v2029
    %v2031 = vlaneseq
    %v2032 = vshrl.u32 %v2031, 7
    %v2033 = vsub.s32 %v2030, %v2032
    %v2034 = vrot.slane %v2027, %v2033
    %v2035 = vcombine.low %v1941, %v1942
    %v2037 = vunpack.c.l.s4 1983009808
    %v2038 = vunpack.c.0.s8 %v2037
    %v2039 = vlaneseq
    %v2040 = vshrl.u32 %v2039, 7
    %v2041 = vsub.s32 %v2038, %v2040
    %v2042 = vrot.slane %v2035, %v2041
    %v2043 = vcombine.low %v2018, %v2026
    %v2044 = vcombine.high %v2018, %v2026
    %v2046 = vunpack.c.l.s4 1934713408
    %v2047 = vunpack.c.0.s8 %v2046
    %v2048 = vlaneseq
    %v2049 = vshrl.u32 %v2048, 7
    %v2050 = vsub.s32 %v2047, %v2049
    %v2051 = vrot.slane %v2043, %v2050
    %v2053 = vunpack.c.l.s4 1934713408
    %v2054 = vunpack.c.0.s8 %v2053
    %v2055 = vlaneseq
    %v2056 = vshrl.u32 %v2055, 7
    %v2057 = vsub.s32 %v2054, %v2056
    %v2058 = vrot.slane %v2044, %v2057
    %v2059 = vcombine.low %v2034, %v2042
    %v2060 = vcombine.high %v2034, %v2042
    %v2062 = vunpack.c.l.s4 1934713408
    %v2063 = vunpack.c.0.s8 %v2062
    %v2064 = vlaneseq
    %v2065 = vshrl.u32 %v2064, 7
    %v2066 = vsub.s32 %v2063, %v2065
    %v2067 = vrot.slane %v2059, %v2066
    %v2069 = vunpack.c.l.s4 1934713408
    %v2070 = vunpack.c.0.s8 %v2069
    %v2071 = vlaneseq
    %v2072 = vshrl.u32 %v2071, 7
    %v2073 = vsub.s32 %v2070, %v2072
    %v2074 = vrot.slane %v2060, %v2073
    %v2075 = vcombine.low %v2051, %v2067
    %v2076 = vcombine.high %v2051, %v2067
    %v2077 = vcombine.low %v2058, %v2074
    %v2078 = vcombine.high %v2058, %v2074
    %v2079 = vcombine.low %v1983, %v1990
    %v2081 = vunpack.c.l.s4 1983009808
    %v2082 = vunpack.c.0.s8 %v2081
    %v2083 = vlaneseq
    %v2084 = vshrl.u32 %v2083, 7
    %v2085 = vsub.s32 %v2082, %v2084
    %v2086 = vrot.slane %v2079, %v2085
    %v2087 = vcombine.low %v2007, %v2008
    %v2089 = vunpack.c.l.s4 1983009808
    %v2090 = vunpack.c.0.s8 %v2089
    %v2091 = vlaneseq
    %v2092 = vshrl.u32 %v2091, 7
    %v2093 = vsub.s32 %v2090, %v2092
    %v2094 = vrot.slane %v2087, %v2093
    %v2095 = vcombine.low %v1999, %v2006
    %v2097 = vunpack.c.l.s4 1983009808
    %v2098 = vunpack.c.0.s8 %v2097
    %v2099 = vlaneseq
    %v2100 = vshrl.u32 %v2099, 7
    %v2101 = vsub.s32 %v2098, %v2100
    %v2102 = vrot.slane %v2095, %v2101
    %v2103 = vcombine.low %v2009, %v2010
    %v2105 = vunpack.c.l.s4 1983009808
    %v2106 = vunpack.c.0.s8 %v2105
    %v2107 = vlaneseq
    %v2108 = vshrl.u32 %v2107, 7
    %v2109 = vsub.s32 %v2106, %v2108
    %v2110 = vrot.slane %v2103, %v2109
    %v2111 = vcombine.low %v2086, %v2094
    %v2112 = vcombine.high %v2086, %v2094
    %v2114 = vunpack.c.l.s4 1934713408
    %v2115 = vunpack.c.0.s8 %v2114
    %v2116 = vlaneseq
    %v2117 = vshrl.u32 %v2116, 7
    %v2118 = vsub.s32 %v2115, %v2117
    %v2119 = vrot.slane %v2111, %v2118
    %v2121 = vunpack.c.l.s4 1934713408
    %v2122 = vunpack.c.0.s8 %v2121
    %v2123 = vlaneseq
    %v2124 = vshrl.u32 %v2123, 7
    %v2125 = vsub.s32 %v2122, %v2124
    %v2126 = vrot.slane %v2112, %v2125
    %v2127 = vcombine.low %v2102, %v2110
    %v2128 = vcombine.high %v2102, %v2110
    %v2130 = vunpack.c.l.s4 1934713408
    %v2131 = vunpack.c.0.s8 %v2130
    %v2132 = vlaneseq
    %v2133 = vshrl.u32 %v2132, 7
    %v2134 = vsub.s32 %v2131, %v2133
    %v2135 = vrot.slane %v2127, %v2134
    %v2137 = vunpack.c.l.s4 1934713408
    %v2138 = vunpack.c.0.s8 %v2137
    %v2139 = vlaneseq
    %v2140 = vshrl.u32 %v2139, 7
    %v2141 = vsub.s32 %v2138, %v2140
    %v2142 = vrot.slane %v2128, %v2141
    %v2143 = vcombine.low %v2119, %v2135
    %v2144 = vcombine.high %v2119, %v2135
    %v2145 = vcombine.low %v2126, %v2142
    %v2146 = vcombine.high %v2126, %v2142
    %2149 = vrot.lane.b32.xlu0 %v2076, 8
    %v2150 = vpop.permute.xlu0 %2149
    %2151 = vrot.lane.b32.xlu0 %v2144, 8
    %v2152 = vpop.permute.xlu0 %2151
    %2157 = vrot.lane.b32.xlu0 %v2077, 16
    %v2158 = vpop.permute.xlu0 %2157
    %2159 = vrot.lane.b32.xlu0 %v2145, 16
    %v2160 = vpop.permute.xlu0 %2159
    %2165 = vrot.lane.b32.xlu0 %v2078, 24
    %v2166 = vpop.permute.xlu0 %2165
    %2167 = vrot.lane.b32.xlu0 %v2146, 24
    %v2168 = vpop.permute.xlu0 %2167
    %v2171 = vsel %vm1041, %v2075, %v2150
    %v2172 = vsel %vm1041, %v2143, %v2152
    %vm2173 = vcmask 130048
    %v2174 = vsel %vm2173, %v2171, %v2158
    %v2175 = vsel %vm2173, %v2172, %v2160
    %vm2176 = vcmask 195584
    %v2177 = vsel %vm2176, %v2174, %v2166
    %v2178 = vsel %vm2176, %v2175, %v2168
    %v2179 = vpack.c.bf16 %v2178, %v2177
    %v2180 = vld [vmem:[%s3] sm:$0xf]
    %v2181 = vld [vmem:[%s3 + $0x4] sm:$0xf]
    %v2182 = vld [vmem:[%s3 + $0x8] sm:$0xf]
    %v2183 = vld [vmem:[%s3 + $0xc] sm:$0xf]
    %v2184 = vld [vmem:[%s4] sm:$0x1]
    %v2186 = vlaneseq
    %v2187 = vshrl.u32 %v2186, 7
    %v2188 = vsub.s32 0, %v2187
    %v2189 = vrot.slane %v2184, %v2188
    %v2195 = vunpack.c.l.b16 %v2180
    %v2196 = vunpack.c.l.b16 %v2181
    %v2197 = vunpack.c.l.b16 %v2182
    %v2198 = vunpack.c.l.b16 %v2183
    %v2199 = vpack.c.b16 %v2196, %v2195
    %v2200 = vpack.c.b16 %v2198, %v2197
    %v2204 = vsel %vm72, %v2179, 0
    %2206 = vmatprep.subr.bf16.mxu0 0
    %2207 = vmatpush1.bf16.msra.mxu0 0
    %2208 = vmatprep.subr.bf16.mxu0 0
    %2209 = vmatpush1.bf16.msra.mxu0 0
    %2210 = vmatprep.subr.bf16.mxu0 0
    %2211 = vmatpush1.bf16.msra.mxu0 0
    %2212 = vmatprep.subr.bf16.mxu0 0
    %2213 = vmatpush1.bf16.msra.mxu0 0
    %2214 = vmatprep.subr.bf16.mxu0 0
    %2215 = vmatpush1.bf16.msra.mxu0 0
    %2216 = vmatprep.subr.bf16.mxu0 0
    %2217 = vmatpush1.bf16.msra.mxu0 0
    %2218 = vmatprep.subr.bf16.mxu0 0
    %2219 = vmatpush1.bf16.msra.mxu0 %v2200
    %2220 = vmatprep.subr.bf16.mxu0 0
    %2221 = vmatpush1.bf16.msra.mxu0 %v2199
    %2222 = vmatprep.subr.bf16.mxu0 0
    %2223 = vmatpush2.bf16.msra.mxu0 0
    %2224 = vmatprep.subr.bf16.mxu0 0
    %2225 = vmatpush2.bf16.msra.mxu0 0
    %2226 = vmatprep.subr.bf16.mxu0 0
    %2227 = vmatpush2.bf16.msra.mxu0 0
    %2228 = vmatprep.subr.bf16.mxu0 0
    %2229 = vmatpush2.bf16.msra.mxu0 0
    %2230 = vmatprep.subr.bf16.mxu0 0
    %2231 = vmatpush2.bf16.msra.mxu0 0
    %2232 = vmatprep.subr.bf16.mxu0 0
    %2233 = vmatpush2.bf16.msra.mxu0 0
    %2234 = vmatprep.subr.bf16.mxu0 0
    %2235 = vmatpush2.bf16.msra.mxu0 0
    %2236 = vmatprep.subr.bf16.mxu0 0
    %2237 = vmatpush2.bf16.msra.mxu0 0
    %2238 = vmatprep.mubr.bf16.mxu0 0
    %2239 = vmatmul.mubr.bf16.gmra.mxu0 %v2204
    %v2240 = vpop.f32.mrf.mxu0
    %v2241 = vadd.f32 %v2189, %v2240
    %v2242 = vpop.f32.mrf.mxu0
    %v2243 = vpop.f32.mrf.mxu0
    %v2244 = vadd.f32 %v2189, %v2243
    %v2245 = vpop.f32.mrf.mxu0
    %2246 = vdwg.mxu0
    %v2247 = vadd.f32 %v46, %v2241
    %v2248 = vadd.f32 %v47, %v2244
    %v2249 = vld [vmem:[%s9] sm:$0x1]
    %v2250 = vld [vmem:[%s10] sm:$0x1]
    %v2251 = vsel %vm72, %v2247, 0.0
    %2252 = vadd.xlane.f32.xlu0 %v2251
    %v2253 = vpop.xlane.xlu0 %2252
    %v2254 = vsel %vm72, %v2248, 0.0
    %2255 = vadd.xlane.f32.xlu0 %v2254
    %v2256 = vpop.xlane.xlu0 %2255
    %v2257 = vrcp.pop 32.0
    %v2258 = vmul.f32 %v2253, %v2257
    %v2259 = vmul.f32 %v2256, %v2257
    %v2260 = vsub.f32 %v2247, %v2258
    %v2261 = vsub.f32 %v2248, %v2259
    %v2262 = vmul.f32 %v2260, %v2260
    %v2263 = vmul.f32 %v2261, %v2261
    %v2264 = vsel %vm72, %v2262, 0.0
    %2265 = vadd.xlane.f32.xlu0 %v2264
    %v2266 = vpop.xlane.xlu0 %2265
    %v2267 = vsel %vm72, %v2263, 0.0
    %2268 = vadd.xlane.f32.xlu0 %v2267
    %v2269 = vpop.xlane.xlu0 %2268
    %v2270 = vmul.f32 %v2266, %v2257
    %v2271 = vmul.f32 %v2269, %v2257
    %v2272 = vadd.f32 %v2270, 1e-05
    %v2273 = vadd.f32 %v2271, 1e-05
    %v2274 = vrsqrt.pop %v2272
    %v2275 = vrsqrt.pop %v2273
    %v2276 = vmul.f32 %v2260, %v2274
    %v2277 = vmul.f32 %v2261, %v2275
    %v2279 = vlaneseq
    %v2280 = vshrl.u32 %v2279, 7
    %v2281 = vsub.s32 0, %v2280
    %v2282 = vrot.slane %v2249, %v2281
    %v2284 = vmul.f32 %v2276, %v2282
    %v2285 = vmul.f32 %v2277, %v2282
    %v2287 = vlaneseq
    %v2288 = vshrl.u32 %v2287, 7
    %v2289 = vsub.s32 0, %v2288
    %v2290 = vrot.slane %v2250, %v2289
    %v2292 = vadd.f32 %v2284, %v2290
    %v2293 = vadd.f32 %v2285, %v2290
    %v2294 = vpack.c.bf16 %v2293, %v2292
    %v2295 = vld [vmem:[%s5] sm:$0xf]
    %v2296 = vld [vmem:[%s5 + $0x4] sm:$0xf]
    %v2297 = vld [vmem:[%s5 + $0x8] sm:$0xf]
    %v2298 = vld [vmem:[%s5 + $0xc] sm:$0xf]
    %v2299 = vld [vmem:[%s6] sm:$0x1]
    %v2301 = vlaneseq
    %v2302 = vshrl.u32 %v2301, 7
    %v2303 = vsub.s32 0, %v2302
    %v2304 = vrot.slane %v2299, %v2303
    %v2310 = vunpack.c.l.b16 %v2295
    %v2311 = vunpack.c.l.b16 %v2296
    %v2312 = vunpack.c.l.b16 %v2297
    %v2313 = vunpack.c.l.b16 %v2298
    %v2314 = vpack.c.b16 %v2311, %v2310
    %v2315 = vpack.c.b16 %v2313, %v2312
    %v2319 = vsel %vm72, %v2294, 0
    %2321 = vmatprep.subr.bf16.mxu0 0
    %2322 = vmatpush1.bf16.msra.mxu0 0
    %2323 = vmatprep.subr.bf16.mxu0 0
    %2324 = vmatpush1.bf16.msra.mxu0 0
    %2325 = vmatprep.subr.bf16.mxu0 0
    %2326 = vmatpush1.bf16.msra.mxu0 0
    %2327 = vmatprep.subr.bf16.mxu0 0
    %2328 = vmatpush1.bf16.msra.mxu0 0
    %2329 = vmatprep.subr.bf16.mxu0 0
    %2330 = vmatpush1.bf16.msra.mxu0 0
    %2331 = vmatprep.subr.bf16.mxu0 0
    %2332 = vmatpush1.bf16.msra.mxu0 0
    %2333 = vmatprep.subr.bf16.mxu0 0
    %2334 = vmatpush1.bf16.msra.mxu0 %v2315
    %2335 = vmatprep.subr.bf16.mxu0 0
    %2336 = vmatpush1.bf16.msra.mxu0 %v2314
    %2337 = vmatprep.subr.bf16.mxu0 0
    %2338 = vmatpush2.bf16.msra.mxu0 0
    %2339 = vmatprep.subr.bf16.mxu0 0
    %2340 = vmatpush2.bf16.msra.mxu0 0
    %2341 = vmatprep.subr.bf16.mxu0 0
    %2342 = vmatpush2.bf16.msra.mxu0 0
    %2343 = vmatprep.subr.bf16.mxu0 0
    %2344 = vmatpush2.bf16.msra.mxu0 0
    %2345 = vmatprep.subr.bf16.mxu0 0
    %2346 = vmatpush2.bf16.msra.mxu0 0
    %2347 = vmatprep.subr.bf16.mxu0 0
    %2348 = vmatpush2.bf16.msra.mxu0 0
    %2349 = vmatprep.subr.bf16.mxu0 0
    %2350 = vmatpush2.bf16.msra.mxu0 0
    %2351 = vmatprep.subr.bf16.mxu0 0
    %2352 = vmatpush2.bf16.msra.mxu0 0
    %2353 = vmatprep.mubr.bf16.mxu0 0
    %2354 = vmatmul.mubr.bf16.gmra.mxu0 %v2319
    %v2355 = vpop.f32.mrf.mxu0
    %v2356 = vadd.f32 %v2304, %v2355
    %v2357 = vpop.f32.mrf.mxu0
    %v2358 = vpop.f32.mrf.mxu0
    %v2359 = vadd.f32 %v2304, %v2358
    %v2360 = vpop.f32.mrf.mxu0
    %2361 = vdwg.mxu0
    %v2362 = vmax.f32 %v2356, 0.0
    %v2363 = vmax.f32 %v2359, 0.0
    %v2364 = vpack.c.bf16 %v2363, %v2362
    %v2365 = vld [vmem:[%s7] sm:$0xf]
    %v2366 = vld [vmem:[%s7 + $0x4] sm:$0xf]
    %v2367 = vld [vmem:[%s7 + $0x8] sm:$0xf]
    %v2368 = vld [vmem:[%s7 + $0xc] sm:$0xf]
    %v2369 = vld [vmem:[%s7 + $0x10] sm:$0xf]
    %v2370 = vld [vmem:[%s7 + $0x14] sm:$0xf]
    %v2371 = vld [vmem:[%s7 + $0x18] sm:$0xf]
    %v2372 = vld [vmem:[%s7 + $0x1c] sm:$0xf]
    %v2373 = vld [vmem:[%s7 + $0x20] sm:$0xf]
    %v2374 = vld [vmem:[%s7 + $0x24] sm:$0xf]
    %v2375 = vld [vmem:[%s7 + $0x28] sm:$0xf]
    %v2376 = vld [vmem:[%s7 + $0x2c] sm:$0xf]
    %v2377 = vld [vmem:[%s7 + $0x30] sm:$0xf]
    %v2378 = vld [vmem:[%s7 + $0x34] sm:$0xf]
    %v2379 = vld [vmem:[%s7 + $0x38] sm:$0xf]
    %v2380 = vld [vmem:[%s7 + $0x3c] sm:$0xf]
    %v2381 = vld [vmem:[%s8] sm:$0x1]
    %v2383 = vlaneseq
    %v2384 = vshrl.u32 %v2383, 7
    %v2385 = vsub.s32 0, %v2384
    %v2386 = vrot.slane %v2381, %v2385
    %v2404 = vunpack.c.l.b16 %v2365
    %v2405 = vunpack.c.l.b16 %v2366
    %v2406 = vunpack.c.l.b16 %v2367
    %v2407 = vunpack.c.l.b16 %v2368
    %v2408 = vunpack.c.l.b16 %v2369
    %v2409 = vunpack.c.l.b16 %v2370
    %v2410 = vunpack.c.l.b16 %v2371
    %v2411 = vunpack.c.l.b16 %v2372
    %v2412 = vunpack.c.l.b16 %v2373
    %v2413 = vunpack.c.l.b16 %v2374
    %v2414 = vunpack.c.l.b16 %v2375
    %v2415 = vunpack.c.l.b16 %v2376
    %v2416 = vunpack.c.l.b16 %v2377
    %v2417 = vunpack.c.l.b16 %v2378
    %v2418 = vunpack.c.l.b16 %v2379
    %v2419 = vunpack.c.l.b16 %v2380
    %v2420 = vpack.c.b16 %v2405, %v2404
    %v2421 = vpack.c.b16 %v2407, %v2406
    %v2422 = vpack.c.b16 %v2409, %v2408
    %v2423 = vpack.c.b16 %v2411, %v2410
    %v2424 = vpack.c.b16 %v2413, %v2412
    %v2425 = vpack.c.b16 %v2415, %v2414
    %v2426 = vpack.c.b16 %v2417, %v2416
    %v2427 = vpack.c.b16 %v2419, %v2418
    %2436 = vmatprep.subr.bf16.mxu0 0
    %2437 = vmatpush1.bf16.msra.mxu0 %v2427
    %2438 = vmatprep.subr.bf16.mxu0 0
    %2439 = vmatpush1.bf16.msra.mxu0 %v2426
    %2440 = vmatprep.subr.bf16.mxu0 0
    %2441 = vmatpush1.bf16.msra.mxu0 %v2425
    %2442 = vmatprep.subr.bf16.mxu0 0
    %2443 = vmatpush1.bf16.msra.mxu0 %v2424
    %2444 = vmatprep.subr.bf16.mxu0 0
    %2445 = vmatpush1.bf16.msra.mxu0 %v2423
    %2446 = vmatprep.subr.bf16.mxu0 0
    %2447 = vmatpush1.bf16.msra.mxu0 %v2422
    %2448 = vmatprep.subr.bf16.mxu0 0
    %2449 = vmatpush1.bf16.msra.mxu0 %v2421
    %2450 = vmatprep.subr.bf16.mxu0 0
    %2451 = vmatpush1.bf16.msra.mxu0 %v2420
    %2452 = vmatprep.subr.bf16.mxu0 0
    %2453 = vmatpush2.bf16.msra.mxu0 0
    %2454 = vmatprep.subr.bf16.mxu0 0
    %2455 = vmatpush2.bf16.msra.mxu0 0
    %2456 = vmatprep.subr.bf16.mxu0 0
    %2457 = vmatpush2.bf16.msra.mxu0 0
    %2458 = vmatprep.subr.bf16.mxu0 0
    %2459 = vmatpush2.bf16.msra.mxu0 0
    %2460 = vmatprep.subr.bf16.mxu0 0
    %2461 = vmatpush2.bf16.msra.mxu0 0
    %2462 = vmatprep.subr.bf16.mxu0 0
    %2463 = vmatpush2.bf16.msra.mxu0 0
    %2464 = vmatprep.subr.bf16.mxu0 0
    %2465 = vmatpush2.bf16.msra.mxu0 0
    %2466 = vmatprep.subr.bf16.mxu0 0
    %2467 = vmatpush2.bf16.msra.mxu0 0
    %2468 = vmatprep.mubr.bf16.mxu0 0
    %2469 = vmatmul.mubr.bf16.gmra.mxu0 %v2364
    %v2470 = vpop.f32.mrf.mxu0
    %v2471 = vadd.f32 %v2386, %v2470
    %v2472 = vpop.f32.mrf.mxu0
    %v2473 = vpop.f32.mrf.mxu0
    %v2474 = vadd.f32 %v2386, %v2473
    %v2475 = vpop.f32.mrf.mxu0
    %2476 = vdwg.mxu0
    %v2477 = vadd.f32 %v2292, %v2471
    %v2478 = vadd.f32 %v2293, %v2474
    %v2479 = vld [vmem:[%s11] sm:$0x1]
    %v2480 = vld [vmem:[%s12] sm:$0x1]
    %v2481 = vsel %vm72, %v2477, 0.0
    %2482 = vadd.xlane.f32.xlu0 %v2481
    %v2483 = vpop.xlane.xlu0 %2482
    %v2484 = vsel %vm72, %v2478, 0.0
    %2485 = vadd.xlane.f32.xlu0 %v2484
    %v2486 = vpop.xlane.xlu0 %2485
    %v2487 = vmul.f32 %v2483, %v2257
    %v2488 = vmul.f32 %v2486, %v2257
    %v2489 = vsub.f32 %v2477, %v2487
    %v2490 = vsub.f32 %v2478, %v2488
    %v2491 = vmul.f32 %v2489, %v2489
    %v2492 = vmul.f32 %v2490, %v2490
    %v2493 = vsel %vm72, %v2491, 0.0
    %2494 = vadd.xlane.f32.xlu0 %v2493
    %v2495 = vpop.xlane.xlu0 %2494
    %v2496 = vsel %vm72, %v2492, 0.0
    %2497 = vadd.xlane.f32.xlu0 %v2496
    %v2498 = vpop.xlane.xlu0 %2497
    %v2499 = vmul.f32 %v2495, %v2257
    %v2500 = vmul.f32 %v2498, %v2257
    %v2501 = vadd.f32 %v2499, 1e-05
    %v2502 = vadd.f32 %v2500, 1e-05
    %v2503 = vrsqrt.pop %v2501
    %v2504 = vrsqrt.pop %v2502
    %v2505 = vmul.f32 %v2489, %v2503
    %v2506 = vmul.f32 %v2490, %v2504
    %v2508 = vlaneseq
    %v2509 = vshrl.u32 %v2508, 7
    %v2510 = vsub.s32 0, %v2509
    %v2511 = vrot.slane %v2479, %v2510
    %v2513 = vmul.f32 %v2505, %v2511
    %v2514 = vmul.f32 %v2506, %v2511
    %v2516 = vlaneseq
    %v2517 = vshrl.u32 %v2516, 7
    %v2518 = vsub.s32 0, %v2517
    %v2519 = vrot.slane %v2480, %v2518
    %v2521 = vadd.f32 %v2513, %v2519
    %v2522 = vadd.f32 %v2514, %v2519
    %2523 = vst.msk [vmem:[#allocation2] sm:$0xff] %vm72, %v2521
    %2524 = vst.msk [vmem:[#allocation2 + $0x8] sm:$0xff] %vm72, %v2522
    // Predicated region
    $region54: #{tpu_custom_call.1} parent=1 // pred_check
      _
    $region55: #{tpu_custom_call.1} parent=1 // pred_check_branch
      %2526 = sbr.rel (0) target = $region57
    $region56: #{tpu_custom_call.1} parent=1 // pred_region
      %s2528 = ssub.s32 256, 256
      %2529 = vsyncadd [#allocation3], %s2528
      %s2530 = sshll.u32 [#allocation2], 4
      %s2531 = int_to_ptr.vmem [resolvable:$true] %s2530
      %2536 = dma.vmem_to_hbm [thread:$0]  %s2531, 256, %s13, [#allocation3], 128, 128, 8
    $region57: #{tpu_custom_call.1} parent=1 // pred_fallthru
      _
    // Predicated region
    $region58: #{tpu_custom_call.1} parent=1 // pred_check
      _
    $region59: #{tpu_custom_call.1} parent=1 // pred_check_branch
      %2538 = sbr.rel (0) target = $region61
    $region60: #{tpu_custom_call.1} parent=1 // pred_region
      %2539 = dma.done [#allocation3], 256
    $region61: #{tpu_custom_call.1} parent=1 // pred_fallthru
      _
    %2540 = vsyncpa [#allocation3], 1

</llo_original>
